<compile_context>
chip_gen: v7x
topology: tpu7x:2x2x1
jax: 0.10.0
libtpu: 0.0.40
codegen_flags: <defaults>
</compile_context>

<pallas_src>
import numpy as np
import jax
import jax.numpy as jnp
from jax.experimental import pallas as pl
from jax.experimental.pallas import tpu as pltpu


# ---------------------------------------------------------------------------
# Host-side (numpy) factor construction -- runs ONCE at model init.
# ---------------------------------------------------------------------------
def _selection_matrix(K, in_size, out_size, stride, padding, dilation):
    """A[k, o, i] = 1 iff o == i*stride - padding + k*dilation (ConvTranspose map)."""
    A = np.zeros((K, out_size, in_size), np.float32)
    for k in range(K):
        for i in range(in_size):
            o = i * stride - padding + k * dilation
            if 0 <= o < out_size:
                A[k, o, i] = 1.0
    return A


def _row_toeplitz(w_pt, b, in_w, *, stride, padding, dilation, output_padding):
    """Per-kernel-row factors R[kh] mapping (in_w*C_in) lanes -> (out_w*C_out) lanes.

    w_pt : (C_in, C_out, KH, KW)  PyTorch ConvTranspose2d weight layout.
    """
    w_np = np.asarray(w_pt, np.float32)
    C_in, C_out, KH, KW = w_np.shape
    out_w = (in_w - 1) * stride - 2 * padding + dilation * (KW - 1) + output_padding + 1
    S_w = _selection_matrix(KW, in_w, out_w, stride, padding, dilation)  # (KW,out_w,in_w)
    S_w = S_w.transpose(0, 2, 1)                                         # (KW,in_w,out_w)
    Wr = w_np.transpose(2, 3, 0, 1)                                      # (KH,KW,Cin,Cout)
    R = np.einsum('kio,hkcd->hicod', S_w, Wr).reshape(KH, in_w * C_in, out_w * C_out)
    b_row = np.tile(np.asarray(b, np.float32), out_w).reshape(1, out_w * C_out)
    return R, b_row, out_w


# ---------------------------------------------------------------------------
# Pallas kernel: one grid step = one batch sample; both layers + tail fused.
# ---------------------------------------------------------------------------
def _make_fused_kernel(K1H, H1, K2H, n_pad):
    def kernel(xm_ref, r1_ref, b1_ref, a2f_ref, r2c_ref, b2_ref, out_ref):
        xm = xm_ref[0]                                     # (H, W*Cin) = (8, 48)
        lanes1 = r1_ref.shape[-1]                          # W1*C1 = 81

        # ---- layer 1: ConvT(6,9,2,s=1).  Row placement (oh = ih + kh) is a
        #      pure shift, so no A1 matmuls: two K=48 dots + shifted VPU adds.
        v1 = None
        for kh in range(K1H):
            u = jnp.dot(xm, r1_ref[kh], preferred_element_type=jnp.float32)   # (8, 81)
            pieces = []
            if kh > 0:
                pieces.append(jnp.zeros((kh, lanes1), jnp.float32))
            pieces.append(u)
            tail = H1 - kh - u.shape[0]
            if tail > 0:
                pieces.append(jnp.zeros((tail, lanes1), jnp.float32))
            shifted = jnp.concatenate(pieces, axis=0) if len(pieces) > 1 else pieces[0]
            v1 = shifted if v1 is None else v1 + shifted
        v1 = v1 + b1_ref[...]                              # (9, 81), bias broadcast

        # ---- layer 2: ConvT(9,10,5,s=3,p=1,d=2,op=1) as two lane-dense dots.
        #  u[ih, kh*n_pad + n] = sum_j v1[ih, j] * R2[kh, j, n]   (weight contraction first)
        u = jnp.dot(v1, r2c_ref[...], preferred_element_type=jnp.float32)     # (9, 5*384)
        #  kh-major restack (vreg-aligned lane slices, sublane concat) -> (45, 384)
        u_stack = jnp.concatenate(
            [u[:, kh * n_pad:(kh + 1) * n_pad] for kh in range(K2H)], axis=0)
        #  row placement + bias:  acc[oh, :] = sum_{kh,ih} A2f[oh, kh*H1+ih] * U_kh[ih, :]
        acc = jnp.dot(a2f_ref[...], u_stack,
                      preferred_element_type=jnp.float32) + b2_ref[...]       # (32, 384)

        # ---- fused tail: v3=v2+3 ; v4=clamp(v3,0) ; v5=clamp(v4,6) ; v2*v5/6
        out_ref[0] = acc * jnp.clip(acc + 3.0, 0.0, 6.0) * (1.0 / 6.0)

    return kernel


# ---------------------------------------------------------------------------
# Model wrapper: factors precomputed once, lean jitted forward.
# ---------------------------------------------------------------------------
class FusedConvTHardSwish:
    def __init__(self, w1, b1, w2, b2, in_h, in_w):
        C1_in, C1_out, K1H, _ = w1.shape
        C2_in, C2_out, K2H, _ = w2.shape

        # layer-1 factors
        R1, b1row, W1 = _row_toeplitz(w1, b1, in_w, stride=1, padding=0,
                                      dilation=1, output_padding=0)
        H1 = (in_h - 1) * 1 - 0 + 1 * (K1H - 1) + 0 + 1                  # 9

        # layer-2 factors
        R2, b2row, W2 = _row_toeplitz(w2, b2, W1, stride=3, padding=1,
                                      dilation=2, output_padding=1)
        H2 = (H1 - 1) * 3 - 2 * 1 + 2 * (K2H - 1) + 1 + 1                # 32
        sel2 = _selection_matrix(K2H, H1, H2, 3, 1, 2)                   # (5, 32, 9)
        A2f = sel2.transpose(1, 0, 2).reshape(H2, K2H * H1)              # (32, 45), kh-major

        # pad layer-2 lane axis 320 -> 384 (zero-filled) and concat kh blocks along lanes
        n_out = W2 * C2_out
        n_pad = ((n_out + 127) // 128) * 128                             # 384
        R2p = np.zeros((K2H, R2.shape[1], n_pad), np.float32)
        R2p[:, :, :n_out] = R2
        R2cat = R2p.transpose(1, 0, 2).reshape(R2.shape[1], K2H * n_pad)  # (81, 1920)
        b2p = np.zeros((1, n_pad), np.float32)
        b2p[:, :n_out] = b2row

        self.dims = dict(in_h=in_h, in_w=in_w, C_in=C1_in, H1=H1, W1=W1, C1=C1_out,
                         H2=H2, W2=W2, C2=C2_out, n_pad=n_pad)

        # device-resident constant operands (created once)
        self.factors = tuple(jnp.asarray(a) for a in (R1, b1row, A2f, R2cat, b2p))

        self._kernel = _make_fused_kernel(K1H, H1, K2H, n_pad)

        flops = 2 * (K1H * in_h * (in_w * C1_in) * (W1 * C1_out)
                     + H1 * (W1 * C1_out) * (K2H * n_pad)
                     + H2 * (K2H * H1) * n_pad) + 4 * H2 * n_pad
        bytes_acc = 4 * (in_h * in_w * C1_in + R1.size + b1row.size + A2f.size
                         + R2cat.size + b2p.size + H2 * n_pad)
        self._cost = pl.CostEstimate(flops=int(flops), bytes_accessed=int(bytes_acc),
                                     transcendentals=0)

        self._forward = jax.jit(self._forward_impl)

    def _forward_impl(self, x_nchw, r1, b1row, a2f, r2cat, b2row):
        d = self.dims
        N = x_nchw.shape[0]
        # (N, C, H, W) -> (N, H, W*C), channels innermost on the lane axis.
        xm = jnp.transpose(x_nchw, (0, 2, 3, 1)).reshape(
            N, d['in_h'], d['in_w'] * d['C_in']).astype(jnp.float32)

        out_m = pl.pallas_call(
            self._kernel,
            out_shape=jax.ShapeDtypeStruct((N, d['H2'], d['n_pad']), jnp.float32),
            grid=(N,),
            in_specs=[
                pl.BlockSpec((1, d['in_h'], d['in_w'] * d['C_in']), lambda n: (n, 0, 0)),
                # Grid-invariant weight factors (constant index_map; for N>1 these
                # could additionally use pipeline_mode=pl.Buffered(1) -- ~0.6 MB
                # total so double-buffering them is harmless today).
                pl.BlockSpec(r1.shape, lambda n: (0, 0, 0)),
                pl.BlockSpec(b1row.shape, lambda n: (0, 0)),
                pl.BlockSpec(a2f.shape, lambda n: (0, 0)),
                pl.BlockSpec(r2cat.shape, lambda n: (0, 0)),
                pl.BlockSpec(b2row.shape, lambda n: (0, 0)),
            ],
            out_specs=pl.BlockSpec((1, d['H2'], d['n_pad']), lambda n: (n, 0, 0)),
            compiler_params=pltpu.CompilerParams(
                dimension_semantics=("parallel",)),
            cost_estimate=self._cost,
        )(xm, r1, b1row, a2f, r2cat, b2row)

        # Cheap XLA epilogue: drop lane padding, (N,H2,W2,C2) -> NCHW.
        # TODO(synk): if the consumer accepts NHWC, return the sliced/reshaped
        # tensor directly and skip this transpose (one fewer dispatch).
        out = out_m[:, :, :d['W2'] * d['C2']].reshape(N, d['H2'], d['W2'], d['C2'])
        return out.transpose(0, 3, 1, 2)

    def __call__(self, x_nchw):
        return self._forward(x_nchw, *self.factors)


# ---------------------------------------------------------------------------
# Pure-XLA reference of PyTorch ConvTranspose2d semantics (self-check only).
# ---------------------------------------------------------------------------
def ref_conv_transpose2d(x_nchw, w_pt, b, *, stride, padding, dilation,
                         output_padding):
    C_in, C_out, KH, KW = w_pt.shape
    w_oihw = jnp.transpose(w_pt[:, :, ::-1, ::-1], (1, 0, 2, 3))
    pad_h = dilation * (KH - 1) - padding
    pad_w = dilation * (KW - 1) - padding
    y = jax.lax.conv_general_dilated(
        x_nchw, w_oihw, window_strides=(1, 1),
        padding=[(pad_h, pad_h + output_padding), (pad_w, pad_w + output_padding)],
        lhs_dilation=(stride, stride), rhs_dilation=(dilation, dilation),
        dimension_numbers=("NCHW", "OIHW", "NCHW"))
    return y + b.reshape(1, C_out, 1, 1)


if __name__ == "__main__":
    key = jax.random.PRNGKey(0)
    kx, kw1, kb1, kw2, kb2 = jax.random.split(key, 5)

    # Input matching the module: x1 = torch.randn(1, 6, 8, 8)
    x1 = jax.random.normal(kx, (1, 6, 8, 8), jnp.float32)

    # PyTorch ConvTranspose2d weight layout (C_in, C_out, kH, kW), ~1/sqrt(fan).
    w1 = jax.random.normal(kw1, (6, 9, 2, 2), jnp.float32) * (1.0 / np.sqrt(6 * 2 * 2))
    b1 = jax.random.normal(kb1, (9,), jnp.float32) * (1.0 / np.sqrt(6 * 2 * 2))
    w2 = jax.random.normal(kw2, (9, 10, 5, 5), jnp.float32) * (1.0 / np.sqrt(9 * 5 * 5))
    b2 = jax.random.normal(kb2, (10,), jnp.float32) * (1.0 / np.sqrt(9 * 5 * 5))

    model = FusedConvTHardSwish(w1, b1, w2, b2, in_h=8, in_w=8)   # factors built once
    out = jax.block_until_ready(model(x1))
    assert out.shape == (1, 10, 32, 32), out.shape

    # Cross-check the fused Pallas kernel against an XLA reference of the same math.
    v1_ref = ref_conv_transpose2d(x1, w1, b1, stride=1, padding=0, dilation=1,
                                  output_padding=0)
    v2_ref = ref_conv_transpose2d(v1_ref, w2, b2, stride=3, padding=1, dilation=2,
                                  output_padding=1)
    out_ref = v2_ref * jnp.clip(v2_ref + 3.0, 0.0, 6.0) / 6.0
    np.testing.assert_allclose(np.asarray(out), np.asarray(out_ref),
                               rtol=2e-3, atol=2e-3)

    print("KERNEL_OK")
</pallas_src>

<mosaic_0001>
module attributes {stable_mosaic.version = 11 : i64} {
  func.func @kernel(%arg0: i32, %arg1: memref<1x8x48xf32, #tpu.memory_space<vmem>>, %arg2: memref<2x48x81xf32, #tpu.memory_space<vmem>>, %arg3: memref<1x81xf32, #tpu.memory_space<vmem>>, %arg4: memref<32x45xf32, #tpu.memory_space<vmem>>, %arg5: memref<81x1920xf32, #tpu.memory_space<vmem>>, %arg6: memref<1x384xf32, #tpu.memory_space<vmem>>, %arg7: memref<1x32x384xf32, #tpu.memory_space<vmem>>) attributes {dimension_semantics = [#tpu.dimension_semantics<parallel>], iteration_bounds = array<i64: 1>, scalar_prefetch = 0 : i64, scratch_operands = 0 : i64, tpu.core_type = #tpu.core_type<tc>, window_params = [{transform_indices = @transform_0, window_bounds = array<i64: 1, 8, 48>}, {pipeline_mode = #tpu.pipeline_mode<synchronous>, transform_indices = @transform_1, window_bounds = array<i64: 2, 48, 81>}, {pipeline_mode = #tpu.pipeline_mode<synchronous>, transform_indices = @transform_2, window_bounds = array<i64: 1, 81>}, {pipeline_mode = #tpu.pipeline_mode<synchronous>, transform_indices = @transform_3, window_bounds = array<i64: 32, 45>}, {pipeline_mode = #tpu.pipeline_mode<synchronous>, transform_indices = @transform_4, window_bounds = array<i64: 81, 1920>}, {pipeline_mode = #tpu.pipeline_mode<synchronous>, transform_indices = @transform_5, window_bounds = array<i64: 1, 384>}, {transform_indices = @transform_6, window_bounds = array<i64: 1, 32, 384>}]} {
    %c0 = arith.constant 0 : index
    %c0_0 = arith.constant 0 : index
    %c0_1 = arith.constant 0 : index
    %0 = vector.load %arg1[%c0, %c0_0, %c0_1] : memref<1x8x48xf32, #tpu.memory_space<vmem>>, vector<1x8x48xf32>
    %1 = vector.shape_cast %0 : vector<1x8x48xf32> to vector<8x48xf32>
    %c0_2 = arith.constant 0 : index
    %c0_3 = arith.constant 0 : index
    %c0_4 = arith.constant 0 : index
    %2 = vector.load %arg2[%c0_2, %c0_3, %c0_4] : memref<2x48x81xf32, #tpu.memory_space<vmem>>, vector<1x48x81xf32>
    %3 = vector.shape_cast %2 : vector<1x48x81xf32> to vector<48x81xf32>
    %cst = arith.constant dense<0.000000e+00> : vector<8x81xf32>
    %4 = tpu.matmul %1, %3, %cst {dimension_numbers = #tpu.dot_dimension_numbers<[1], [0], [0], [1], [0, 0, 1, 1], [], []>} : vector<8x48xf32>, vector<48x81xf32>, vector<8x81xf32> -> vector<8x81xf32>
    %cst_5 = arith.constant 0.000000e+00 : f32
    %5 = vector.broadcast %cst_5 : f32 to vector<1x81xf32>
    %6 = tpu.concatenate %4, %5 in 0 : vector<8x81xf32>, vector<1x81xf32> -> vector<9x81xf32>
    %c1 = arith.constant 1 : index
    %c0_6 = arith.constant 0 : index
    %c0_7 = arith.constant 0 : index
    %7 = vector.load %arg2[%c1, %c0_6, %c0_7] : memref<2x48x81xf32, #tpu.memory_space<vmem>>, vector<1x48x81xf32>
    %8 = vector.shape_cast %7 : vector<1x48x81xf32> to vector<48x81xf32>
    %cst_8 = arith.constant dense<0.000000e+00> : vector<8x81xf32>
    %9 = tpu.matmul %1, %8, %cst_8 {dimension_numbers = #tpu.dot_dimension_numbers<[1], [0], [0], [1], [0, 0, 1, 1], [], []>} : vector<8x48xf32>, vector<48x81xf32>, vector<8x81xf32> -> vector<8x81xf32>
    %cst_9 = arith.constant 0.000000e+00 : f32
    %10 = vector.broadcast %cst_9 : f32 to vector<1x81xf32>
    %11 = tpu.concatenate %10, %9 in 0 : vector<1x81xf32>, vector<8x81xf32> -> vector<9x81xf32>
    %12 = arith.addf %6, %11 : vector<9x81xf32>
    %c0_10 = arith.constant 0 : index
    %c0_11 = arith.constant 0 : index
    %13 = vector.load %arg3[%c0_10, %c0_11] : memref<1x81xf32, #tpu.memory_space<vmem>>, vector<1x81xf32>
    %14 = vector.broadcast %13 : vector<1x81xf32> to vector<9x81xf32>
    %15 = arith.addf %12, %14 : vector<9x81xf32>
    %c0_12 = arith.constant 0 : index
    %c0_13 = arith.constant 0 : index
    %16 = vector.load %arg5[%c0_12, %c0_13] : memref<81x1920xf32, #tpu.memory_space<vmem>>, vector<81x1920xf32>
    %cst_14 = arith.constant dense<0.000000e+00> : vector<9x1920xf32>
    %17 = tpu.matmul %15, %16, %cst_14 {dimension_numbers = #tpu.dot_dimension_numbers<[1], [0], [0], [1], [0, 0, 1, 1], [], []>} : vector<9x81xf32>, vector<81x1920xf32>, vector<9x1920xf32> -> vector<9x1920xf32>
    %18 = vector.extract_strided_slice %17 {offsets = [0, 0], sizes = [9, 384], strides = [1, 1]} : vector<9x1920xf32> to vector<9x384xf32>
    %19 = vector.extract_strided_slice %17 {offsets = [0, 384], sizes = [9, 384], strides = [1, 1]} : vector<9x1920xf32> to vector<9x384xf32>
    %20 = vector.extract_strided_slice %17 {offsets = [0, 768], sizes = [9, 384], strides = [1, 1]} : vector<9x1920xf32> to vector<9x384xf32>
    %21 = vector.extract_strided_slice %17 {offsets = [0, 1152], sizes = [9, 384], strides = [1, 1]} : vector<9x1920xf32> to vector<9x384xf32>
    %22 = vector.extract_strided_slice %17 {offsets = [0, 1536], sizes = [9, 384], strides = [1, 1]} : vector<9x1920xf32> to vector<9x384xf32>
    %23 = tpu.concatenate %18, %19, %20, %21, %22 in 0 : vector<9x384xf32>, vector<9x384xf32>, vector<9x384xf32>, vector<9x384xf32>, vector<9x384xf32> -> vector<45x384xf32>
    %c0_15 = arith.constant 0 : index
    %c0_16 = arith.constant 0 : index
    %24 = vector.load %arg4[%c0_15, %c0_16] : memref<32x45xf32, #tpu.memory_space<vmem>>, vector<32x45xf32>
    %cst_17 = arith.constant dense<0.000000e+00> : vector<32x384xf32>
    %25 = tpu.matmul %24, %23, %cst_17 {dimension_numbers = #tpu.dot_dimension_numbers<[1], [0], [0], [1], [0, 0, 1, 1], [], []>} : vector<32x45xf32>, vector<45x384xf32>, vector<32x384xf32> -> vector<32x384xf32>
    %c0_18 = arith.constant 0 : index
    %c0_19 = arith.constant 0 : index
    %26 = vector.load %arg6[%c0_18, %c0_19] : memref<1x384xf32, #tpu.memory_space<vmem>>, vector<1x384xf32>
    %27 = vector.broadcast %26 : vector<1x384xf32> to vector<32x384xf32>
    %28 = arith.addf %25, %27 : vector<32x384xf32>
    %cst_20 = arith.constant 3.000000e+00 : f32
    %29 = vector.broadcast %cst_20 : f32 to vector<32x384xf32>
    %30 = arith.addf %28, %29 : vector<32x384xf32>
    %cst_21 = arith.constant 0.000000e+00 : f32
    %cst_22 = arith.constant 6.000000e+00 : f32
    %31 = vector.broadcast %cst_21 : f32 to vector<32x384xf32>
    %32 = arith.maximumf %31, %30 : vector<32x384xf32>
    %33 = vector.broadcast %cst_22 : f32 to vector<32x384xf32>
    %34 = arith.minimumf %33, %32 : vector<32x384xf32>
    %35 = arith.mulf %28, %34 : vector<32x384xf32>
    %cst_23 = arith.constant 0.166666672 : f32
    %36 = vector.broadcast %cst_23 : f32 to vector<32x384xf32>
    %37 = arith.mulf %35, %36 : vector<32x384xf32>
    %c0_24 = arith.constant 0 : index
    %c0_25 = arith.constant 0 : index
    %c0_26 = arith.constant 0 : index
    %38 = vector.load %arg7[%c0_24, %c0_25, %c0_26] : memref<1x32x384xf32, #tpu.memory_space<vmem>>, vector<1x32x384xf32>
    %39 = vector.shape_cast %38 : vector<1x32x384xf32> to vector<32x384xf32>
    %40 = vector.shape_cast %37 : vector<32x384xf32> to vector<1x32x384xf32>
    tpu.vector_store %arg7[%c0_24, %c0_25, %c0_26], %40 {strides = array<i32>} : memref<1x32x384xf32, #tpu.memory_space<vmem>>, vector<1x32x384xf32>,
    return
  }
  func.func @transform_0(%arg0: i32) -> (i32, i32, i32) {
    %c0_i32 = arith.constant 0 : i32
    %c0_i32_0 = arith.constant 0 : i32
    %c0_i32_1 = arith.constant 0 : i32
    return %arg0, %c0_i32, %c0_i32_0 : i32, i32, i32
  }
  func.func @transform_1(%arg0: i32) -> (i32, i32, i32) {
    %c0_i32 = arith.constant 0 : i32
    %c0_i32_0 = arith.constant 0 : i32
    %c0_i32_1 = arith.constant 0 : i32
    %c0_i32_2 = arith.constant 0 : i32
    return %c0_i32, %c0_i32_0, %c0_i32_1 : i32, i32, i32
  }
  func.func @transform_2(%arg0: i32) -> (i32, i32) {
    %c0_i32 = arith.constant 0 : i32
    %c0_i32_0 = arith.constant 0 : i32
    %c0_i32_1 = arith.constant 0 : i32
    return %c0_i32, %c0_i32_0 : i32, i32
  }
  func.func @transform_3(%arg0: i32) -> (i32, i32) {
    %c0_i32 = arith.constant 0 : i32
    %c0_i32_0 = arith.constant 0 : i32
    %c0_i32_1 = arith.constant 0 : i32
    return %c0_i32, %c0_i32_0 : i32, i32
  }
  func.func @transform_4(%arg0: i32) -> (i32, i32) {
    %c0_i32 = arith.constant 0 : i32
    %c0_i32_0 = arith.constant 0 : i32
    %c0_i32_1 = arith.constant 0 : i32
    return %c0_i32, %c0_i32_0 : i32, i32
  }
  func.func @transform_5(%arg0: i32) -> (i32, i32) {
    %c0_i32 = arith.constant 0 : i32
    %c0_i32_0 = arith.constant 0 : i32
    %c0_i32_1 = arith.constant 0 : i32
    return %c0_i32, %c0_i32_0 : i32, i32
  }
  func.func @transform_6(%arg0: i32) -> (i32, i32, i32) {
    %c0_i32 = arith.constant 0 : i32
    %c0_i32_0 = arith.constant 0 : i32
    %c0_i32_1 = arith.constant 0 : i32
    return %arg0, %c0_i32, %c0_i32_0 : i32, i32, i32
  }
}

</mosaic_0001>

<llo_original>
// kernel: _forward_impl.1
$region0: #{_forward_impl.1}
  #allocation0 [shape = 'u32[]', space=smem, size = 0x4, offset = 0x4, fixed_abs, tag = 'smem constant byte address 0x4 - core index']
  #allocation1 [shape = 'u32[144,128]{1,0:T(1,128)}', space=vmem, size = 0x12000, scoped, tag = 'internal scratch']
  %s0 = inlined_call_operand.vmem [shape: f32[1,8,48], index: 0, kind: input, shape index: {}]
  %s1 = inlined_call_operand.vmem [shape: f32[2,48,81], index: 1, kind: input, shape index: {}]
  %s2 = inlined_call_operand.vmem [shape: f32[1,81], index: 2, kind: input, shape index: {}]
  %s3 = inlined_call_operand.vmem [shape: f32[32,45], index: 3, kind: input, shape index: {}]
  %s4 = inlined_call_operand.hbm [shape: f32[81,1920], index: 4, kind: input, shape index: {}]
  %s5 = inlined_call_operand.vmem [shape: f32[1,384], index: 5, kind: input, shape index: {}]
  %s6 = inlined_call_operand.vmem [shape: f32[1,32,384], index: 6, kind: output, shape index: {}]
  %s7 = sld [smem:[#allocation0]]
  $region38: #{_forward_impl.1} parent=0
    _
  %s9 = ssub.s32 1, %s7
  %s10 = scalar_select 0, %s9, %s7
  $region1: #{_forward_impl.1} parent=0
    #allocation2 [shape = 'u8[675840]{0}', space=vmem, size = 0xa5000, scoped, tag = 'input window, operand 4, single buffered']
    #allocation3 [shape = 's32[1]{0}', space=sflag, size = 0x4, scoped, tag = 'scoped memory for _forward_impl.1']
    %11 = vsyncpa [#allocation3], 0
    // Predicated region
    $region2: #{_forward_impl.1} parent=1 // pred_check
      _
    $region3: #{_forward_impl.1} parent=1 // pred_check_branch
      %13 = sbr.rel (0) target = $region5
    $region4: #{_forward_impl.1} parent=1 // pred_region
      _
    $region5: #{_forward_impl.1} parent=1 // pred_fallthru
      _
    // Predicated region
    $region6: #{_forward_impl.1} parent=1 // pred_check
      _
    $region7: #{_forward_impl.1} parent=1 // pred_check_branch
      %15 = sbr.rel (0) target = $region9
    $region8: #{_forward_impl.1} parent=1 // pred_region
      _
    $region9: #{_forward_impl.1} parent=1 // pred_fallthru
      _
    // Predicated region
    $region10: #{_forward_impl.1} parent=1 // pred_check
      _
    $region11: #{_forward_impl.1} parent=1 // pred_check_branch
      %17 = sbr.rel (0) target = $region13
    $region12: #{_forward_impl.1} parent=1 // pred_region
      _
    $region13: #{_forward_impl.1} parent=1 // pred_fallthru
      _
    // Predicated region
    $region14: #{_forward_impl.1} parent=1 // pred_check
      _
    $region15: #{_forward_impl.1} parent=1 // pred_check_branch
      %19 = sbr.rel (0) target = $region17
    $region16: #{_forward_impl.1} parent=1 // pred_region
      _
    $region17: #{_forward_impl.1} parent=1 // pred_fallthru
      _
    // Predicated region
    $region18: #{_forward_impl.1} parent=1 // pred_check
      _
    $region19: #{_forward_impl.1} parent=1 // pred_check_branch
      %21 = sbr.rel (0) target = $region21
    $region20: #{_forward_impl.1} parent=1 // pred_region
      %s23 = ssub.s32 21120, 21120
      %24 = vsyncadd [#allocation3], %s23
      %s25 = sshll.u32 [#allocation2], 4
      %s26 = int_to_ptr.vmem [resolvable:$true] %s25
      %31 = dma.hbm_to_vmem [thread:$0]  %s4, 21120, %s26, [#allocation3], 1920, 1920, 120
    $region21: #{_forward_impl.1} parent=1 // pred_fallthru
      _
    // Predicated region
    $region22: #{_forward_impl.1} parent=1 // pred_check
      _
    $region23: #{_forward_impl.1} parent=1 // pred_check_branch
      %33 = sbr.rel (0) target = $region25
    $region24: #{_forward_impl.1} parent=1 // pred_region
      _
    $region25: #{_forward_impl.1} parent=1 // pred_fallthru
      _
    // Predicated region
    $region26: #{_forward_impl.1} parent=1 // pred_check
      _
    $region27: #{_forward_impl.1} parent=1 // pred_check_branch
      %35 = sbr.rel (0) target = $region29
    $region28: #{_forward_impl.1} parent=1 // pred_region
      %36 = dma.done [#allocation3], 21120
    $region29: #{_forward_impl.1} parent=1 // pred_fallthru
      _
    %v37 = vld [vmem:[%s0] sm:$0xff]
    %v38 = vld [vmem:[%s1] sm:$0xff]
    %v39 = vld [vmem:[%s1 + $0x8] sm:$0xff]
    %v40 = vld [vmem:[%s1 + $0x10] sm:$0xff]
    %v41 = vld [vmem:[%s1 + $0x18] sm:$0xff]
    %v42 = vld [vmem:[%s1 + $0x20] sm:$0xff]
    %v43 = vld [vmem:[%s1 + $0x28] sm:$0xff]
    %vm44 = vcmask 392192
    %v46 = vsel %vm44, %v37, 0
    %48 = vmatprep.subr.mxu0 0.0
    %49 = vmatpush1.msra.mxu0 %v38
    %50 = vmatprep.subr.mxu0 0.0
    %51 = vmatpush1.msra.mxu0 %v39
    %52 = vmatprep.subr.mxu0 0.0
    %53 = vmatpush1.msra.mxu0 %v40
    %54 = vmatprep.subr.mxu0 0.0
    %55 = vmatpush1.msra.mxu0 %v41
    %56 = vmatprep.subr.mxu0 0.0
    %57 = vmatpush1.msra.mxu0 %v42
    %58 = vmatprep.subr.mxu0 0.0
    %59 = vmatpush1.msra.mxu0 %v43
    %60 = vmatprep.subr.mxu0 0.0
    %61 = vmatpush1.msra.mxu0 0.0
    %62 = vmatprep.subr.mxu0 0.0
    %63 = vmatpush1.msra.mxu0 0.0
    %64 = vmatprep.subr.mxu0 0.0
    %65 = vmatpush1.msra.mxu0 0.0
    %66 = vmatprep.subr.mxu0 0.0
    %67 = vmatpush1.msra.mxu0 0.0
    %68 = vmatprep.subr.mxu0 0.0
    %69 = vmatpush1.msra.mxu0 0.0
    %70 = vmatprep.subr.mxu0 0.0
    %71 = vmatpush1.msra.mxu0 0.0
    %72 = vmatprep.subr.mxu0 0.0
    %73 = vmatpush1.msra.mxu0 0.0
    %74 = vmatprep.subr.mxu0 0.0
    %75 = vmatpush1.msra.mxu0 0.0
    %76 = vmatprep.subr.mxu0 0.0
    %77 = vmatpush1.msra.mxu0 0.0
    %78 = vmatprep.subr.mxu0 0.0
    %79 = vmatpush1.msra.mxu0 0.0
    %80 = vmatprep.subr.mxu0 0.0
    %81 = vmatpush1.msra.mxu0 0.0
    %82 = vmatprep.subr.mxu0 0.0
    %83 = vmatpush1.msra.mxu0 0.0
    %84 = vmatprep.subr.mxu0 0.0
    %85 = vmatpush1.msra.mxu0 0.0
    %86 = vmatprep.subr.mxu0 0.0
    %87 = vmatpush1.msra.mxu0 0.0
    %88 = vmatprep.subr.mxu0 0.0
    %89 = vmatpush1.msra.mxu0 0.0
    %90 = vmatprep.subr.mxu0 0.0
    %91 = vmatpush1.msra.mxu0 0.0
    %92 = vmatprep.subr.mxu0 0.0
    %93 = vmatpush1.msra.mxu0 0.0
    %94 = vmatprep.subr.mxu0 0.0
    %95 = vmatpush1.msra.mxu0 0.0
    %96 = vmatprep.subr.mxu0 0.0
    %97 = vmatpush1.msra.mxu0 0.0
    %98 = vmatprep.subr.mxu0 0.0
    %99 = vmatpush1.msra.mxu0 0.0
    %100 = vmatprep.subr.mxu0 0.0
    %101 = vmatpush1.msra.mxu0 0.0
    %102 = vmatprep.subr.mxu0 0.0
    %103 = vmatpush1.msra.mxu0 0.0
    %104 = vmatprep.subr.mxu0 0.0
    %105 = vmatpush1.msra.mxu0 0.0
    %106 = vmatprep.subr.mxu0 0.0
    %107 = vmatpush1.msra.mxu0 0.0
    %108 = vmatprep.subr.mxu0 0.0
    %109 = vmatpush1.msra.mxu0 0.0
    %110 = vmatprep.subr.mxu0 0.0
    %111 = vmatpush1.msra.mxu0 0.0
    %112 = vmatprep.mubr.f32.mxu0 0.0
    %113 = vmatmul.mubr.f32.gmra.mrb[0].mxu0 %v46
    %v114 = vpop.f32.mrb[0].mxu0
    %v115 = vadd.f32 0.0, %v114
    %v116 = vpop.f32.mrb[0].mxu0
    %117 = vdwg.mxu0
    %s118 = scalar_lea.vmem %s1, 48
    %v119 = vld [vmem:[%s118] sm:$0xff]
    %v120 = vld [vmem:[%s118 + $0x8] sm:$0xff]
    %v121 = vld [vmem:[%s118 + $0x10] sm:$0xff]
    %v122 = vld [vmem:[%s118 + $0x18] sm:$0xff]
    %v123 = vld [vmem:[%s118 + $0x20] sm:$0xff]
    %v124 = vld [vmem:[%s118 + $0x28] sm:$0xff]
    %125 = vmatprep.subr.mxu0 0.0
    %126 = vmatpush1.msra.mxu0 %v119
    %127 = vmatprep.subr.mxu0 0.0
    %128 = vmatpush1.msra.mxu0 %v120
    %129 = vmatprep.subr.mxu0 0.0
    %130 = vmatpush1.msra.mxu0 %v121
    %131 = vmatprep.subr.mxu0 0.0
    %132 = vmatpush1.msra.mxu0 %v122
    %133 = vmatprep.subr.mxu0 0.0
    %134 = vmatpush1.msra.mxu0 %v123
    %135 = vmatprep.subr.mxu0 0.0
    %136 = vmatpush1.msra.mxu0 %v124
    %137 = vmatprep.subr.mxu0 0.0
    %138 = vmatpush1.msra.mxu0 0.0
    %139 = vmatprep.subr.mxu0 0.0
    %140 = vmatpush1.msra.mxu0 0.0
    %141 = vmatprep.subr.mxu0 0.0
    %142 = vmatpush1.msra.mxu0 0.0
    %143 = vmatprep.subr.mxu0 0.0
    %144 = vmatpush1.msra.mxu0 0.0
    %145 = vmatprep.subr.mxu0 0.0
    %146 = vmatpush1.msra.mxu0 0.0
    %147 = vmatprep.subr.mxu0 0.0
    %148 = vmatpush1.msra.mxu0 0.0
    %149 = vmatprep.subr.mxu0 0.0
    %150 = vmatpush1.msra.mxu0 0.0
    %151 = vmatprep.subr.mxu0 0.0
    %152 = vmatpush1.msra.mxu0 0.0
    %153 = vmatprep.subr.mxu0 0.0
    %154 = vmatpush1.msra.mxu0 0.0
    %155 = vmatprep.subr.mxu0 0.0
    %156 = vmatpush1.msra.mxu0 0.0
    %157 = vmatprep.subr.mxu0 0.0
    %158 = vmatpush1.msra.mxu0 0.0
    %159 = vmatprep.subr.mxu0 0.0
    %160 = vmatpush1.msra.mxu0 0.0
    %161 = vmatprep.subr.mxu0 0.0
    %162 = vmatpush1.msra.mxu0 0.0
    %163 = vmatprep.subr.mxu0 0.0
    %164 = vmatpush1.msra.mxu0 0.0
    %165 = vmatprep.subr.mxu0 0.0
    %166 = vmatpush1.msra.mxu0 0.0
    %167 = vmatprep.subr.mxu0 0.0
    %168 = vmatpush1.msra.mxu0 0.0
    %169 = vmatprep.subr.mxu0 0.0
    %170 = vmatpush1.msra.mxu0 0.0
    %171 = vmatprep.subr.mxu0 0.0
    %172 = vmatpush1.msra.mxu0 0.0
    %173 = vmatprep.subr.mxu0 0.0
    %174 = vmatpush1.msra.mxu0 0.0
    %175 = vmatprep.subr.mxu0 0.0
    %176 = vmatpush1.msra.mxu0 0.0
    %177 = vmatprep.subr.mxu0 0.0
    %178 = vmatpush1.msra.mxu0 0.0
    %179 = vmatprep.subr.mxu0 0.0
    %180 = vmatpush1.msra.mxu0 0.0
    %181 = vmatprep.subr.mxu0 0.0
    %182 = vmatpush1.msra.mxu0 0.0
    %183 = vmatprep.subr.mxu0 0.0
    %184 = vmatpush1.msra.mxu0 0.0
    %185 = vmatprep.subr.mxu0 0.0
    %186 = vmatpush1.msra.mxu0 0.0
    %187 = vmatprep.subr.mxu0 0.0
    %188 = vmatpush1.msra.mxu0 0.0
    %189 = vmatprep.mubr.f32.mxu0 0.0
    %190 = vmatmul.mubr.f32.gmra.mrb[0].mxu0 %v46
    %v191 = vpop.f32.mrb[0].mxu0
    %v192 = vadd.f32 0.0, %v191
    %v193 = vpop.f32.mrb[0].mxu0
    %194 = vdwg.mxu0
    %v196 = vrot.slane %v192, 7
    %vm198 = vcmask 1040384
    %v199 = vsel %vm198, 0.0, %v196
    %v200 = vadd.f32 %v115, %v199
    %v201 = vadd.f32 %v196, 0.0
    %v202 = vld [vmem:[%s2] sm:$0x1]
    %v204 = vlaneseq
    %v205 = vshrl.u32 %v204, 7
    %v206 = vsub.s32 0, %v205
    %v207 = vrot.slane %v202, %v206
    %v209 = vadd.f32 %v200, %v207
    %v210 = vadd.f32 %v201, %v207
    %v211 = vld [vmem:[#allocation2] sm:$0xff]
    %v212 = vld [vmem:[#allocation2 + $0x8] sm:$0xff]
    %v213 = vld [vmem:[#allocation2 + $0x10] sm:$0xff]
    %v214 = vld [vmem:[#allocation2 + $0x18] sm:$0xff]
    %v215 = vld [vmem:[#allocation2 + $0x20] sm:$0xff]
    %v216 = vld [vmem:[#allocation2 + $0x28] sm:$0xff]
    %v217 = vld [vmem:[#allocation2 + $0x30] sm:$0xff]
    %v218 = vld [vmem:[#allocation2 + $0x38] sm:$0xff]
    %v219 = vld [vmem:[#allocation2 + $0x40] sm:$0xff]
    %v220 = vld [vmem:[#allocation2 + $0x48] sm:$0xff]
    %v221 = vld [vmem:[#allocation2 + $0x50] sm:$0xff]
    %v222 = vld [vmem:[#allocation2 + $0x58] sm:$0xff]
    %v223 = vld [vmem:[#allocation2 + $0x60] sm:$0xff]
    %v224 = vld [vmem:[#allocation2 + $0x68] sm:$0xff]
    %v225 = vld [vmem:[#allocation2 + $0x70] sm:$0xff]
    %v226 = vld [vmem:[#allocation2 + $0x78] sm:$0xff]
    %v227 = vld [vmem:[#allocation2 + $0x80] sm:$0xff]
    %v228 = vld [vmem:[#allocation2 + $0x88] sm:$0xff]
    %v229 = vld [vmem:[#allocation2 + $0x90] sm:$0xff]
    %v230 = vld [vmem:[#allocation2 + $0x98] sm:$0xff]
    %v231 = vld [vmem:[#allocation2 + $0xa0] sm:$0xff]
    %v232 = vld [vmem:[#allocation2 + $0xa8] sm:$0xff]
    %v233 = vld [vmem:[#allocation2 + $0xb0] sm:$0xff]
    %v234 = vld [vmem:[#allocation2 + $0xb8] sm:$0xff]
    %v235 = vld [vmem:[#allocation2 + $0xc0] sm:$0xff]
    %v236 = vld [vmem:[#allocation2 + $0xc8] sm:$0xff]
    %v237 = vld [vmem:[#allocation2 + $0xd0] sm:$0xff]
    %v238 = vld [vmem:[#allocation2 + $0xd8] sm:$0xff]
    %v239 = vld [vmem:[#allocation2 + $0xe0] sm:$0xff]
    %v240 = vld [vmem:[#allocation2 + $0xe8] sm:$0xff]
    %v241 = vld [vmem:[#allocation2 + $0xf0] sm:$0xff]
    %v242 = vld [vmem:[#allocation2 + $0xf8] sm:$0xff]
    %v243 = vld [vmem:[#allocation2 + $0x100] sm:$0xff]
    %v244 = vld [vmem:[#allocation2 + $0x108] sm:$0xff]
    %v245 = vld [vmem:[#allocation2 + $0x110] sm:$0xff]
    %v246 = vld [vmem:[#allocation2 + $0x118] sm:$0xff]
    %v247 = vld [vmem:[#allocation2 + $0x120] sm:$0xff]
    %v248 = vld [vmem:[#allocation2 + $0x128] sm:$0xff]
    %v249 = vld [vmem:[#allocation2 + $0x130] sm:$0xff]
    %v250 = vld [vmem:[#allocation2 + $0x138] sm:$0xff]
    %v251 = vld [vmem:[#allocation2 + $0x140] sm:$0xff]
    %v252 = vld [vmem:[#allocation2 + $0x148] sm:$0xff]
    %v253 = vld [vmem:[#allocation2 + $0x150] sm:$0xff]
    %v254 = vld [vmem:[#allocation2 + $0x158] sm:$0xff]
    %v255 = vld [vmem:[#allocation2 + $0x160] sm:$0xff]
    %v256 = vld [vmem:[#allocation2 + $0x168] sm:$0xff]
    %v257 = vld [vmem:[#allocation2 + $0x170] sm:$0xff]
    %v258 = vld [vmem:[#allocation2 + $0x178] sm:$0xff]
    %v259 = vld [vmem:[#allocation2 + $0x180] sm:$0xff]
    %v260 = vld [vmem:[#allocation2 + $0x188] sm:$0xff]
    %v261 = vld [vmem:[#allocation2 + $0x190] sm:$0xff]
    %v262 = vld [vmem:[#allocation2 + $0x198] sm:$0xff]
    %v263 = vld [vmem:[#allocation2 + $0x1a0] sm:$0xff]
    %v264 = vld [vmem:[#allocation2 + $0x1a8] sm:$0xff]
    %v265 = vld [vmem:[#allocation2 + $0x1b0] sm:$0xff]
    %v266 = vld [vmem:[#allocation2 + $0x1b8] sm:$0xff]
    %v267 = vld [vmem:[#allocation2 + $0x1c0] sm:$0xff]
    %v268 = vld [vmem:[#allocation2 + $0x1c8] sm:$0xff]
    %v269 = vld [vmem:[#allocation2 + $0x1d0] sm:$0xff]
    %v270 = vld [vmem:[#allocation2 + $0x1d8] sm:$0xff]
    %v271 = vld [vmem:[#allocation2 + $0x1e0] sm:$0xff]
    %v272 = vld [vmem:[#allocation2 + $0x1e8] sm:$0xff]
    %v273 = vld [vmem:[#allocation2 + $0x1f0] sm:$0xff]
    %v274 = vld [vmem:[#allocation2 + $0x1f8] sm:$0xff]
    %v275 = vld [vmem:[#allocation2 + $0x200] sm:$0xff]
    %v276 = vld [vmem:[#allocation2 + $0x208] sm:$0xff]
    %v277 = vld [vmem:[#allocation2 + $0x210] sm:$0xff]
    %v278 = vld [vmem:[#allocation2 + $0x218] sm:$0xff]
    %v279 = vld [vmem:[#allocation2 + $0x220] sm:$0xff]
    %v280 = vld [vmem:[#allocation2 + $0x228] sm:$0xff]
    %v281 = vld [vmem:[#allocation2 + $0x230] sm:$0xff]
    %v282 = vld [vmem:[#allocation2 + $0x238] sm:$0xff]
    %v283 = vld [vmem:[#allocation2 + $0x240] sm:$0xff]
    %v284 = vld [vmem:[#allocation2 + $0x248] sm:$0xff]
    %v285 = vld [vmem:[#allocation2 + $0x250] sm:$0xff]
    %v286 = vld [vmem:[#allocation2 + $0x258] sm:$0xff]
    %v287 = vld [vmem:[#allocation2 + $0x260] sm:$0xff]
    %v288 = vld [vmem:[#allocation2 + $0x268] sm:$0xff]
    %v289 = vld [vmem:[#allocation2 + $0x270] sm:$0xff]
    %v290 = vld [vmem:[#allocation2 + $0x278] sm:$0xff]
    %v291 = vld [vmem:[#allocation2 + $0x280] sm:$0xff]
    %v292 = vld [vmem:[#allocation2 + $0x288] sm:$0xff]
    %v293 = vld [vmem:[#allocation2 + $0x290] sm:$0xff]
    %v294 = vld [vmem:[#allocation2 + $0x298] sm:$0xff]
    %v295 = vld [vmem:[#allocation2 + $0x2a0] sm:$0xff]
    %v296 = vld [vmem:[#allocation2 + $0x2a8] sm:$0xff]
    %v297 = vld [vmem:[#allocation2 + $0x2b0] sm:$0xff]
    %v298 = vld [vmem:[#allocation2 + $0x2b8] sm:$0xff]
    %v299 = vld [vmem:[#allocation2 + $0x2c0] sm:$0xff]
    %v300 = vld [vmem:[#allocation2 + $0x2c8] sm:$0xff]
    %v301 = vld [vmem:[#allocation2 + $0x2d0] sm:$0xff]
    %v302 = vld [vmem:[#allocation2 + $0x2d8] sm:$0xff]
    %v303 = vld [vmem:[#allocation2 + $0x2e0] sm:$0xff]
    %v304 = vld [vmem:[#allocation2 + $0x2e8] sm:$0xff]
    %v305 = vld [vmem:[#allocation2 + $0x2f0] sm:$0xff]
    %v306 = vld [vmem:[#allocation2 + $0x2f8] sm:$0xff]
    %v307 = vld [vmem:[#allocation2 + $0x300] sm:$0xff]
    %v308 = vld [vmem:[#allocation2 + $0x308] sm:$0xff]
    %v309 = vld [vmem:[#allocation2 + $0x310] sm:$0xff]
    %v310 = vld [vmem:[#allocation2 + $0x318] sm:$0xff]
    %v311 = vld [vmem:[#allocation2 + $0x320] sm:$0xff]
    %v312 = vld [vmem:[#allocation2 + $0x328] sm:$0xff]
    %v313 = vld [vmem:[#allocation2 + $0x330] sm:$0xff]
    %v314 = vld [vmem:[#allocation2 + $0x338] sm:$0xff]
    %v315 = vld [vmem:[#allocation2 + $0x340] sm:$0xff]
    %v316 = vld [vmem:[#allocation2 + $0x348] sm:$0xff]
    %v317 = vld [vmem:[#allocation2 + $0x350] sm:$0xff]
    %v318 = vld [vmem:[#allocation2 + $0x358] sm:$0xff]
    %v319 = vld [vmem:[#allocation2 + $0x360] sm:$0xff]
    %v320 = vld [vmem:[#allocation2 + $0x368] sm:$0xff]
    %v321 = vld [vmem:[#allocation2 + $0x370] sm:$0xff]
    %v322 = vld [vmem:[#allocation2 + $0x378] sm:$0xff]
    %v323 = vld [vmem:[#allocation2 + $0x380] sm:$0xff]
    %v324 = vld [vmem:[#allocation2 + $0x388] sm:$0xff]
    %v325 = vld [vmem:[#allocation2 + $0x390] sm:$0xff]
    %v326 = vld [vmem:[#allocation2 + $0x398] sm:$0xff]
    %v327 = vld [vmem:[#allocation2 + $0x3a0] sm:$0xff]
    %v328 = vld [vmem:[#allocation2 + $0x3a8] sm:$0xff]
    %v329 = vld [vmem:[#allocation2 + $0x3b0] sm:$0xff]
    %v330 = vld [vmem:[#allocation2 + $0x3b8] sm:$0xff]
    %v331 = vld [vmem:[#allocation2 + $0x3c0] sm:$0xff]
    %v332 = vld [vmem:[#allocation2 + $0x3c8] sm:$0xff]
    %v333 = vld [vmem:[#allocation2 + $0x3d0] sm:$0xff]
    %v334 = vld [vmem:[#allocation2 + $0x3d8] sm:$0xff]
    %v335 = vld [vmem:[#allocation2 + $0x3e0] sm:$0xff]
    %v336 = vld [vmem:[#allocation2 + $0x3e8] sm:$0xff]
    %v337 = vld [vmem:[#allocation2 + $0x3f0] sm:$0xff]
    %v338 = vld [vmem:[#allocation2 + $0x3f8] sm:$0xff]
    %v339 = vld [vmem:[#allocation2 + $0x400] sm:$0xff]
    %v340 = vld [vmem:[#allocation2 + $0x408] sm:$0xff]
    %v341 = vld [vmem:[#allocation2 + $0x410] sm:$0xff]
    %v342 = vld [vmem:[#allocation2 + $0x418] sm:$0xff]
    %v343 = vld [vmem:[#allocation2 + $0x420] sm:$0xff]
    %v344 = vld [vmem:[#allocation2 + $0x428] sm:$0xff]
    %v345 = vld [vmem:[#allocation2 + $0x430] sm:$0xff]
    %v346 = vld [vmem:[#allocation2 + $0x438] sm:$0xff]
    %v347 = vld [vmem:[#allocation2 + $0x440] sm:$0xff]
    %v348 = vld [vmem:[#allocation2 + $0x448] sm:$0xff]
    %v349 = vld [vmem:[#allocation2 + $0x450] sm:$0xff]
    %v350 = vld [vmem:[#allocation2 + $0x458] sm:$0xff]
    %v351 = vld [vmem:[#allocation2 + $0x460] sm:$0xff]
    %v352 = vld [vmem:[#allocation2 + $0x468] sm:$0xff]
    %v353 = vld [vmem:[#allocation2 + $0x470] sm:$0xff]
    %v354 = vld [vmem:[#allocation2 + $0x478] sm:$0xff]
    %v355 = vld [vmem:[#allocation2 + $0x480] sm:$0xff]
    %v356 = vld [vmem:[#allocation2 + $0x488] sm:$0xff]
    %v357 = vld [vmem:[#allocation2 + $0x490] sm:$0xff]
    %v358 = vld [vmem:[#allocation2 + $0x498] sm:$0xff]
    %v359 = vld [vmem:[#allocation2 + $0x4a0] sm:$0xff]
    %v360 = vld [vmem:[#allocation2 + $0x4a8] sm:$0xff]
    %v361 = vld [vmem:[#allocation2 + $0x4b0] sm:$0x1]
    %v362 = vld [vmem:[#allocation2 + $0x4b8] sm:$0x1]
    %v363 = vld [vmem:[#allocation2 + $0x4c0] sm:$0x1]
    %v364 = vld [vmem:[#allocation2 + $0x4c8] sm:$0x1]
    %v365 = vld [vmem:[#allocation2 + $0x4d0] sm:$0x1]
    %v366 = vld [vmem:[#allocation2 + $0x4d8] sm:$0x1]
    %v367 = vld [vmem:[#allocation2 + $0x4e0] sm:$0x1]
    %v368 = vld [vmem:[#allocation2 + $0x4e8] sm:$0x1]
    %v369 = vld [vmem:[#allocation2 + $0x4f0] sm:$0x1]
    %v370 = vld [vmem:[#allocation2 + $0x4f8] sm:$0x1]
    %v371 = vld [vmem:[#allocation2 + $0x500] sm:$0x1]
    %v372 = vld [vmem:[#allocation2 + $0x508] sm:$0x1]
    %v373 = vld [vmem:[#allocation2 + $0x510] sm:$0x1]
    %v374 = vld [vmem:[#allocation2 + $0x518] sm:$0x1]
    %v375 = vld [vmem:[#allocation2 + $0x520] sm:$0x1]
    %vm376 = vcmask 662528
    %v378 = vsel %vm376, %v209, 0
    %v381 = vsel %vm376, %v210, 0
    %v384 = vsel %vm198, %v361, 0
    %v387 = vsel %vm198, %v362, 0
    %v390 = vsel %vm198, %v363, 0
    %v393 = vsel %vm198, %v364, 0
    %v396 = vsel %vm198, %v365, 0
    %v399 = vsel %vm198, %v366, 0
    %v402 = vsel %vm198, %v367, 0
    %v405 = vsel %vm198, %v368, 0
    %v408 = vsel %vm198, %v369, 0
    %v411 = vsel %vm198, %v370, 0
    %v414 = vsel %vm198, %v371, 0
    %v417 = vsel %vm198, %v372, 0
    %v420 = vsel %vm198, %v373, 0
    %v423 = vsel %vm198, %v374, 0
    %v426 = vsel %vm198, %v375, 0
    %428 = vmatprep.subr.mxu0 %v212
    %429 = vmatpush1.msra.mxu0 %v211
    %430 = vmatprep.subr.mxu0 %v227
    %431 = vmatpush1.msra.mxu0 %v226
    %432 = vmatprep.subr.mxu0 %v242
    %433 = vmatpush1.msra.mxu0 %v241
    %434 = vmatprep.subr.mxu0 %v257
    %435 = vmatpush1.msra.mxu0 %v256
    %436 = vmatprep.subr.mxu0 %v272
    %437 = vmatpush1.msra.mxu0 %v271
    %438 = vmatprep.subr.mxu0 %v287
    %439 = vmatpush1.msra.mxu0 %v286
    %440 = vmatprep.subr.mxu0 %v302
    %441 = vmatpush1.msra.mxu0 %v301
    %442 = vmatprep.subr.mxu0 %v317
    %443 = vmatpush1.msra.mxu0 %v316
    %444 = vmatprep.subr.mxu0 %v332
    %445 = vmatpush1.msra.mxu0 %v331
    %446 = vmatprep.subr.mxu0 %v347
    %447 = vmatpush1.msra.mxu0 %v346
    %448 = vmatprep.subr.mxu0 %v387
    %449 = vmatpush1.msra.mxu0 %v384
    %450 = vmatprep.subr.mxu0 0.0
    %451 = vmatpush1.msra.mxu0 0.0
    %452 = vmatprep.subr.mxu0 0.0
    %453 = vmatpush1.msra.mxu0 0.0
    %454 = vmatprep.subr.mxu0 0.0
    %455 = vmatpush1.msra.mxu0 0.0
    %456 = vmatprep.subr.mxu0 0.0
    %457 = vmatpush1.msra.mxu0 0.0
    %458 = vmatprep.subr.mxu0 0.0
    %459 = vmatpush1.msra.mxu0 0.0
    %460 = vmatprep.subr.mxu0 0.0
    %461 = vmatpush1.msra.mxu0 0.0
    %462 = vmatprep.subr.mxu0 0.0
    %463 = vmatpush1.msra.mxu0 0.0
    %464 = vmatprep.subr.mxu0 0.0
    %465 = vmatpush1.msra.mxu0 0.0
    %466 = vmatprep.subr.mxu0 0.0
    %467 = vmatpush1.msra.mxu0 0.0
    %468 = vmatprep.subr.mxu0 0.0
    %469 = vmatpush1.msra.mxu0 0.0
    %470 = vmatprep.subr.mxu0 0.0
    %471 = vmatpush1.msra.mxu0 0.0
    %472 = vmatprep.subr.mxu0 0.0
    %473 = vmatpush1.msra.mxu0 0.0
    %474 = vmatprep.subr.mxu0 0.0
    %475 = vmatpush1.msra.mxu0 0.0
    %476 = vmatprep.subr.mxu0 0.0
    %477 = vmatpush1.msra.mxu0 0.0
    %478 = vmatprep.subr.mxu0 0.0
    %479 = vmatpush1.msra.mxu0 0.0
    %480 = vmatprep.subr.mxu0 0.0
    %481 = vmatpush1.msra.mxu0 0.0
    %482 = vmatprep.subr.mxu0 0.0
    %483 = vmatpush1.msra.mxu0 0.0
    %484 = vmatprep.subr.mxu0 0.0
    %485 = vmatpush1.msra.mxu0 0.0
    %486 = vmatprep.subr.mxu0 0.0
    %487 = vmatpush1.msra.mxu0 0.0
    %488 = vmatprep.subr.mxu0 0.0
    %489 = vmatpush1.msra.mxu0 0.0
    %490 = vmatprep.subr.mxu0 0.0
    %491 = vmatpush1.msra.mxu0 0.0
    %492 = vmatprep.mubr.f32.mxu0 0.0
    %493 = vmatmul.mubr.f32.gmra.mrb[0].mxu0 %v378
    %v494 = vpop.f32.mrb[0].mxu0
    %v495 = vadd.f32 0.0, %v494
    %v496 = vpop.f32.mrb[0].mxu0
    %v497 = vadd.f32 0.0, %v496
    %498 = vmatprep.mubr.f32.mxu0 0.0
    %499 = vmatmul.mubr.f32.gmra.mrb[0].mxu0 %v381
    %v500 = vpop.f32.mrb[0].mxu0
    %v501 = vadd.f32 0.0, %v500
    %v502 = vpop.f32.mrb[0].mxu0
    %v503 = vadd.f32 0.0, %v502
    %504 = vdwg.mxu0
    %505 = vmatprep.subr.mxu0 %v214
    %506 = vmatpush1.msra.mxu0 %v213
    %507 = vmatprep.subr.mxu0 %v229
    %508 = vmatpush1.msra.mxu0 %v228
    %509 = vmatprep.subr.mxu0 %v244
    %510 = vmatpush1.msra.mxu0 %v243
    %511 = vmatprep.subr.mxu0 %v259
    %512 = vmatpush1.msra.mxu0 %v258
    %513 = vmatprep.subr.mxu0 %v274
    %514 = vmatpush1.msra.mxu0 %v273
    %515 = vmatprep.subr.mxu0 %v289
    %516 = vmatpush1.msra.mxu0 %v288
    %517 = vmatprep.subr.mxu0 %v304
    %518 = vmatpush1.msra.mxu0 %v303
    %519 = vmatprep.subr.mxu0 %v319
    %520 = vmatpush1.msra.mxu0 %v318
    %521 = vmatprep.subr.mxu0 %v334
    %522 = vmatpush1.msra.mxu0 %v333
    %523 = vmatprep.subr.mxu0 %v349
    %524 = vmatpush1.msra.mxu0 %v348
    %525 = vmatprep.subr.mxu0 %v393
    %526 = vmatpush1.msra.mxu0 %v390
    %527 = vmatprep.subr.mxu0 0.0
    %528 = vmatpush1.msra.mxu0 0.0
    %529 = vmatprep.subr.mxu0 0.0
    %530 = vmatpush1.msra.mxu0 0.0
    %531 = vmatprep.subr.mxu0 0.0
    %532 = vmatpush1.msra.mxu0 0.0
    %533 = vmatprep.subr.mxu0 0.0
    %534 = vmatpush1.msra.mxu0 0.0
    %535 = vmatprep.subr.mxu0 0.0
    %536 = vmatpush1.msra.mxu0 0.0
    %537 = vmatprep.subr.mxu0 0.0
    %538 = vmatpush1.msra.mxu0 0.0
    %539 = vmatprep.subr.mxu0 0.0
    %540 = vmatpush1.msra.mxu0 0.0
    %541 = vmatprep.subr.mxu0 0.0
    %542 = vmatpush1.msra.mxu0 0.0
    %543 = vmatprep.subr.mxu0 0.0
    %544 = vmatpush1.msra.mxu0 0.0
    %545 = vmatprep.subr.mxu0 0.0
    %546 = vmatpush1.msra.mxu0 0.0
    %547 = vmatprep.subr.mxu0 0.0
    %548 = vmatpush1.msra.mxu0 0.0
    %549 = vmatprep.subr.mxu0 0.0
    %550 = vmatpush1.msra.mxu0 0.0
    %551 = vmatprep.subr.mxu0 0.0
    %552 = vmatpush1.msra.mxu0 0.0
    %553 = vmatprep.subr.mxu0 0.0
    %554 = vmatpush1.msra.mxu0 0.0
    %555 = vmatprep.subr.mxu0 0.0
    %556 = vmatpush1.msra.mxu0 0.0
    %557 = vmatprep.subr.mxu0 0.0
    %558 = vmatpush1.msra.mxu0 0.0
    %559 = vmatprep.subr.mxu0 0.0
    %560 = vmatpush1.msra.mxu0 0.0
    %561 = vmatprep.subr.mxu0 0.0
    %562 = vmatpush1.msra.mxu0 0.0
    %563 = vmatprep.subr.mxu0 0.0
    %564 = vmatpush1.msra.mxu0 0.0
    %565 = vmatprep.subr.mxu0 0.0
    %566 = vmatpush1.msra.mxu0 0.0
    %567 = vmatprep.subr.mxu0 0.0
    %568 = vmatpush1.msra.mxu0 0.0
    %569 = vmatprep.mubr.f32.mxu0 0.0
    %570 = vmatmul.mubr.f32.gmra.mrb[0].mxu0 %v378
    %v571 = vpop.f32.mrb[0].mxu0
    %v572 = vadd.f32 0.0, %v571
    %v573 = vpop.f32.mrb[0].mxu0
    %v574 = vadd.f32 0.0, %v573
    %575 = vmatprep.mubr.f32.mxu0 0.0
    %576 = vmatmul.mubr.f32.gmra.mrb[0].mxu0 %v381
    %v577 = vpop.f32.mrb[0].mxu0
    %v578 = vadd.f32 0.0, %v577
    %v579 = vpop.f32.mrb[0].mxu0
    %v580 = vadd.f32 0.0, %v579
    %581 = vdwg.mxu0
    %582 = vmatprep.subr.mxu0 %v216
    %583 = vmatpush1.msra.mxu0 %v215
    %584 = vmatprep.subr.mxu0 %v231
    %585 = vmatpush1.msra.mxu0 %v230
    %586 = vmatprep.subr.mxu0 %v246
    %587 = vmatpush1.msra.mxu0 %v245
    %588 = vmatprep.subr.mxu0 %v261
    %589 = vmatpush1.msra.mxu0 %v260
    %590 = vmatprep.subr.mxu0 %v276
    %591 = vmatpush1.msra.mxu0 %v275
    %592 = vmatprep.subr.mxu0 %v291
    %593 = vmatpush1.msra.mxu0 %v290
    %594 = vmatprep.subr.mxu0 %v306
    %595 = vmatpush1.msra.mxu0 %v305
    %596 = vmatprep.subr.mxu0 %v321
    %597 = vmatpush1.msra.mxu0 %v320
    %598 = vmatprep.subr.mxu0 %v336
    %599 = vmatpush1.msra.mxu0 %v335
    %600 = vmatprep.subr.mxu0 %v351
    %601 = vmatpush1.msra.mxu0 %v350
    %602 = vmatprep.subr.mxu0 %v399
    %603 = vmatpush1.msra.mxu0 %v396
    %604 = vmatprep.subr.mxu0 0.0
    %605 = vmatpush1.msra.mxu0 0.0
    %606 = vmatprep.subr.mxu0 0.0
    %607 = vmatpush1.msra.mxu0 0.0
    %608 = vmatprep.subr.mxu0 0.0
    %609 = vmatpush1.msra.mxu0 0.0
    %610 = vmatprep.subr.mxu0 0.0
    %611 = vmatpush1.msra.mxu0 0.0
    %612 = vmatprep.subr.mxu0 0.0
    %613 = vmatpush1.msra.mxu0 0.0
    %614 = vmatprep.subr.mxu0 0.0
    %615 = vmatpush1.msra.mxu0 0.0
    %616 = vmatprep.subr.mxu0 0.0
    %617 = vmatpush1.msra.mxu0 0.0
    %618 = vmatprep.subr.mxu0 0.0
    %619 = vmatpush1.msra.mxu0 0.0
    %620 = vmatprep.subr.mxu0 0.0
    %621 = vmatpush1.msra.mxu0 0.0
    %622 = vmatprep.subr.mxu0 0.0
    %623 = vmatpush1.msra.mxu0 0.0
    %624 = vmatprep.subr.mxu0 0.0
    %625 = vmatpush1.msra.mxu0 0.0
    %626 = vmatprep.subr.mxu0 0.0
    %627 = vmatpush1.msra.mxu0 0.0
    %628 = vmatprep.subr.mxu0 0.0
    %629 = vmatpush1.msra.mxu0 0.0
    %630 = vmatprep.subr.mxu0 0.0
    %631 = vmatpush1.msra.mxu0 0.0
    %632 = vmatprep.subr.mxu0 0.0
    %633 = vmatpush1.msra.mxu0 0.0
    %634 = vmatprep.subr.mxu0 0.0
    %635 = vmatpush1.msra.mxu0 0.0
    %636 = vmatprep.subr.mxu0 0.0
    %637 = vmatpush1.msra.mxu0 0.0
    %638 = vmatprep.subr.mxu0 0.0
    %639 = vmatpush1.msra.mxu0 0.0
    %640 = vmatprep.subr.mxu0 0.0
    %641 = vmatpush1.msra.mxu0 0.0
    %642 = vmatprep.subr.mxu0 0.0
    %643 = vmatpush1.msra.mxu0 0.0
    %644 = vmatprep.subr.mxu0 0.0
    %645 = vmatpush1.msra.mxu0 0.0
    %646 = vmatprep.mubr.f32.mxu0 0.0
    %647 = vmatmul.mubr.f32.gmra.mrb[0].mxu0 %v378
    %v648 = vpop.f32.mrb[0].mxu0
    %v649 = vadd.f32 0.0, %v648
    %v650 = vpop.f32.mrb[0].mxu0
    %v651 = vadd.f32 0.0, %v650
    %652 = vmatprep.mubr.f32.mxu0 0.0
    %653 = vmatmul.mubr.f32.gmra.mrb[0].mxu0 %v381
    %v654 = vpop.f32.mrb[0].mxu0
    %v655 = vadd.f32 0.0, %v654
    %v656 = vpop.f32.mrb[0].mxu0
    %v657 = vadd.f32 0.0, %v656
    %658 = vdwg.mxu0
    %659 = vmatprep.subr.mxu0 %v218
    %660 = vmatpush1.msra.mxu0 %v217
    %661 = vmatprep.subr.mxu0 %v233
    %662 = vmatpush1.msra.mxu0 %v232
    %663 = vmatprep.subr.mxu0 %v248
    %664 = vmatpush1.msra.mxu0 %v247
    %665 = vmatprep.subr.mxu0 %v263
    %666 = vmatpush1.msra.mxu0 %v262
    %667 = vmatprep.subr.mxu0 %v278
    %668 = vmatpush1.msra.mxu0 %v277
    %669 = vmatprep.subr.mxu0 %v293
    %670 = vmatpush1.msra.mxu0 %v292
    %671 = vmatprep.subr.mxu0 %v308
    %672 = vmatpush1.msra.mxu0 %v307
    %673 = vmatprep.subr.mxu0 %v323
    %674 = vmatpush1.msra.mxu0 %v322
    %675 = vmatprep.subr.mxu0 %v338
    %676 = vmatpush1.msra.mxu0 %v337
    %677 = vmatprep.subr.mxu0 %v353
    %678 = vmatpush1.msra.mxu0 %v352
    %679 = vmatprep.subr.mxu0 %v405
    %680 = vmatpush1.msra.mxu0 %v402
    %681 = vmatprep.subr.mxu0 0.0
    %682 = vmatpush1.msra.mxu0 0.0
    %683 = vmatprep.subr.mxu0 0.0
    %684 = vmatpush1.msra.mxu0 0.0
    %685 = vmatprep.subr.mxu0 0.0
    %686 = vmatpush1.msra.mxu0 0.0
    %687 = vmatprep.subr.mxu0 0.0
    %688 = vmatpush1.msra.mxu0 0.0
    %689 = vmatprep.subr.mxu0 0.0
    %690 = vmatpush1.msra.mxu0 0.0
    %691 = vmatprep.subr.mxu0 0.0
    %692 = vmatpush1.msra.mxu0 0.0
    %693 = vmatprep.subr.mxu0 0.0
    %694 = vmatpush1.msra.mxu0 0.0
    %695 = vmatprep.subr.mxu0 0.0
    %696 = vmatpush1.msra.mxu0 0.0
    %697 = vmatprep.subr.mxu0 0.0
    %698 = vmatpush1.msra.mxu0 0.0
    %699 = vmatprep.subr.mxu0 0.0
    %700 = vmatpush1.msra.mxu0 0.0
    %701 = vmatprep.subr.mxu0 0.0
    %702 = vmatpush1.msra.mxu0 0.0
    %703 = vmatprep.subr.mxu0 0.0
    %704 = vmatpush1.msra.mxu0 0.0
    %705 = vmatprep.subr.mxu0 0.0
    %706 = vmatpush1.msra.mxu0 0.0
    %707 = vmatprep.subr.mxu0 0.0
    %708 = vmatpush1.msra.mxu0 0.0
    %709 = vmatprep.subr.mxu0 0.0
    %710 = vmatpush1.msra.mxu0 0.0
    %711 = vmatprep.subr.mxu0 0.0
    %712 = vmatpush1.msra.mxu0 0.0
    %713 = vmatprep.subr.mxu0 0.0
    %714 = vmatpush1.msra.mxu0 0.0
    %715 = vmatprep.subr.mxu0 0.0
    %716 = vmatpush1.msra.mxu0 0.0
    %717 = vmatprep.subr.mxu0 0.0
    %718 = vmatpush1.msra.mxu0 0.0
    %719 = vmatprep.subr.mxu0 0.0
    %720 = vmatpush1.msra.mxu0 0.0
    %721 = vmatprep.subr.mxu0 0.0
    %722 = vmatpush1.msra.mxu0 0.0
    %723 = vmatprep.mubr.f32.mxu0 0.0
    %724 = vmatmul.mubr.f32.gmra.mrb[0].mxu0 %v378
    %v725 = vpop.f32.mrb[0].mxu0
    %v726 = vadd.f32 0.0, %v725
    %v727 = vpop.f32.mrb[0].mxu0
    %v728 = vadd.f32 0.0, %v727
    %729 = vmatprep.mubr.f32.mxu0 0.0
    %730 = vmatmul.mubr.f32.gmra.mrb[0].mxu0 %v381
    %v731 = vpop.f32.mrb[0].mxu0
    %v732 = vadd.f32 0.0, %v731
    %v733 = vpop.f32.mrb[0].mxu0
    %v734 = vadd.f32 0.0, %v733
    %735 = vdwg.mxu0
    %736 = vmatprep.subr.mxu0 %v220
    %737 = vmatpush1.msra.mxu0 %v219
    %738 = vmatprep.subr.mxu0 %v235
    %739 = vmatpush1.msra.mxu0 %v234
    %740 = vmatprep.subr.mxu0 %v250
    %741 = vmatpush1.msra.mxu0 %v249
    %742 = vmatprep.subr.mxu0 %v265
    %743 = vmatpush1.msra.mxu0 %v264
    %744 = vmatprep.subr.mxu0 %v280
    %745 = vmatpush1.msra.mxu0 %v279
    %746 = vmatprep.subr.mxu0 %v295
    %747 = vmatpush1.msra.mxu0 %v294
    %748 = vmatprep.subr.mxu0 %v310
    %749 = vmatpush1.msra.mxu0 %v309
    %750 = vmatprep.subr.mxu0 %v325
    %751 = vmatpush1.msra.mxu0 %v324
    %752 = vmatprep.subr.mxu0 %v340
    %753 = vmatpush1.msra.mxu0 %v339
    %754 = vmatprep.subr.mxu0 %v355
    %755 = vmatpush1.msra.mxu0 %v354
    %756 = vmatprep.subr.mxu0 %v411
    %757 = vmatpush1.msra.mxu0 %v408
    %758 = vmatprep.subr.mxu0 0.0
    %759 = vmatpush1.msra.mxu0 0.0
    %760 = vmatprep.subr.mxu0 0.0
    %761 = vmatpush1.msra.mxu0 0.0
    %762 = vmatprep.subr.mxu0 0.0
    %763 = vmatpush1.msra.mxu0 0.0
    %764 = vmatprep.subr.mxu0 0.0
    %765 = vmatpush1.msra.mxu0 0.0
    %766 = vmatprep.subr.mxu0 0.0
    %767 = vmatpush1.msra.mxu0 0.0
    %768 = vmatprep.subr.mxu0 0.0
    %769 = vmatpush1.msra.mxu0 0.0
    %770 = vmatprep.subr.mxu0 0.0
    %771 = vmatpush1.msra.mxu0 0.0
    %772 = vmatprep.subr.mxu0 0.0
    %773 = vmatpush1.msra.mxu0 0.0
    %774 = vmatprep.subr.mxu0 0.0
    %775 = vmatpush1.msra.mxu0 0.0
    %776 = vmatprep.subr.mxu0 0.0
    %777 = vmatpush1.msra.mxu0 0.0
    %778 = vmatprep.subr.mxu0 0.0
    %779 = vmatpush1.msra.mxu0 0.0
    %780 = vmatprep.subr.mxu0 0.0
    %781 = vmatpush1.msra.mxu0 0.0
    %782 = vmatprep.subr.mxu0 0.0
    %783 = vmatpush1.msra.mxu0 0.0
    %784 = vmatprep.subr.mxu0 0.0
    %785 = vmatpush1.msra.mxu0 0.0
    %786 = vmatprep.subr.mxu0 0.0
    %787 = vmatpush1.msra.mxu0 0.0
    %788 = vmatprep.subr.mxu0 0.0
    %789 = vmatpush1.msra.mxu0 0.0
    %790 = vmatprep.subr.mxu0 0.0
    %791 = vmatpush1.msra.mxu0 0.0
    %792 = vmatprep.subr.mxu0 0.0
    %793 = vmatpush1.msra.mxu0 0.0
    %794 = vmatprep.subr.mxu0 0.0
    %795 = vmatpush1.msra.mxu0 0.0
    %796 = vmatprep.subr.mxu0 0.0
    %797 = vmatpush1.msra.mxu0 0.0
    %798 = vmatprep.subr.mxu0 0.0
    %799 = vmatpush1.msra.mxu0 0.0
    %800 = vmatprep.mubr.f32.mxu0 0.0
    %801 = vmatmul.mubr.f32.gmra.mrb[0].mxu0 %v378
    %v802 = vpop.f32.mrb[0].mxu0
    %v803 = vadd.f32 0.0, %v802
    %v804 = vpop.f32.mrb[0].mxu0
    %v805 = vadd.f32 0.0, %v804
    %806 = vmatprep.mubr.f32.mxu0 0.0
    %807 = vmatmul.mubr.f32.gmra.mrb[0].mxu0 %v381
    %v808 = vpop.f32.mrb[0].mxu0
    %v809 = vadd.f32 0.0, %v808
    %v810 = vpop.f32.mrb[0].mxu0
    %v811 = vadd.f32 0.0, %v810
    %812 = vdwg.mxu0
    %813 = vmatprep.subr.mxu0 %v222
    %814 = vmatpush1.msra.mxu0 %v221
    %815 = vmatprep.subr.mxu0 %v237
    %816 = vmatpush1.msra.mxu0 %v236
    %817 = vmatprep.subr.mxu0 %v252
    %818 = vmatpush1.msra.mxu0 %v251
    %819 = vmatprep.subr.mxu0 %v267
    %820 = vmatpush1.msra.mxu0 %v266
    %821 = vmatprep.subr.mxu0 %v282
    %822 = vmatpush1.msra.mxu0 %v281
    %823 = vmatprep.subr.mxu0 %v297
    %824 = vmatpush1.msra.mxu0 %v296
    %825 = vmatprep.subr.mxu0 %v312
    %826 = vmatpush1.msra.mxu0 %v311
    %827 = vmatprep.subr.mxu0 %v327
    %828 = vmatpush1.msra.mxu0 %v326
    %829 = vmatprep.subr.mxu0 %v342
    %830 = vmatpush1.msra.mxu0 %v341
    %831 = vmatprep.subr.mxu0 %v357
    %832 = vmatpush1.msra.mxu0 %v356
    %833 = vmatprep.subr.mxu0 %v417
    %834 = vmatpush1.msra.mxu0 %v414
    %835 = vmatprep.subr.mxu0 0.0
    %836 = vmatpush1.msra.mxu0 0.0
    %837 = vmatprep.subr.mxu0 0.0
    %838 = vmatpush1.msra.mxu0 0.0
    %839 = vmatprep.subr.mxu0 0.0
    %840 = vmatpush1.msra.mxu0 0.0
    %841 = vmatprep.subr.mxu0 0.0
    %842 = vmatpush1.msra.mxu0 0.0
    %843 = vmatprep.subr.mxu0 0.0
    %844 = vmatpush1.msra.mxu0 0.0
    %845 = vmatprep.subr.mxu0 0.0
    %846 = vmatpush1.msra.mxu0 0.0
    %847 = vmatprep.subr.mxu0 0.0
    %848 = vmatpush1.msra.mxu0 0.0
    %849 = vmatprep.subr.mxu0 0.0
    %850 = vmatpush1.msra.mxu0 0.0
    %851 = vmatprep.subr.mxu0 0.0
    %852 = vmatpush1.msra.mxu0 0.0
    %853 = vmatprep.subr.mxu0 0.0
    %854 = vmatpush1.msra.mxu0 0.0
    %855 = vmatprep.subr.mxu0 0.0
    %856 = vmatpush1.msra.mxu0 0.0
    %857 = vmatprep.subr.mxu0 0.0
    %858 = vmatpush1.msra.mxu0 0.0
    %859 = vmatprep.subr.mxu0 0.0
    %860 = vmatpush1.msra.mxu0 0.0
    %861 = vmatprep.subr.mxu0 0.0
    %862 = vmatpush1.msra.mxu0 0.0
    %863 = vmatprep.subr.mxu0 0.0
    %864 = vmatpush1.msra.mxu0 0.0
    %865 = vmatprep.subr.mxu0 0.0
    %866 = vmatpush1.msra.mxu0 0.0
    %867 = vmatprep.subr.mxu0 0.0
    %868 = vmatpush1.msra.mxu0 0.0
    %869 = vmatprep.subr.mxu0 0.0
    %870 = vmatpush1.msra.mxu0 0.0
    %871 = vmatprep.subr.mxu0 0.0
    %872 = vmatpush1.msra.mxu0 0.0
    %873 = vmatprep.subr.mxu0 0.0
    %874 = vmatpush1.msra.mxu0 0.0
    %875 = vmatprep.subr.mxu0 0.0
    %876 = vmatpush1.msra.mxu0 0.0
    %877 = vmatprep.mubr.f32.mxu0 0.0
    %878 = vmatmul.mubr.f32.gmra.mrb[0].mxu0 %v378
    %v879 = vpop.f32.mrb[0].mxu0
    %v880 = vadd.f32 0.0, %v879
    %v881 = vpop.f32.mrb[0].mxu0
    %v882 = vadd.f32 0.0, %v881
    %883 = vmatprep.mubr.f32.mxu0 0.0
    %884 = vmatmul.mubr.f32.gmra.mrb[0].mxu0 %v381
    %v885 = vpop.f32.mrb[0].mxu0
    %v886 = vadd.f32 0.0, %v885
    %v887 = vpop.f32.mrb[0].mxu0
    %v888 = vadd.f32 0.0, %v887
    %889 = vdwg.mxu0
    %890 = vmatprep.subr.mxu0 %v224
    %891 = vmatpush1.msra.mxu0 %v223
    %892 = vmatprep.subr.mxu0 %v239
    %893 = vmatpush1.msra.mxu0 %v238
    %894 = vmatprep.subr.mxu0 %v254
    %895 = vmatpush1.msra.mxu0 %v253
    %896 = vmatprep.subr.mxu0 %v269
    %897 = vmatpush1.msra.mxu0 %v268
    %898 = vmatprep.subr.mxu0 %v284
    %899 = vmatpush1.msra.mxu0 %v283
    %900 = vmatprep.subr.mxu0 %v299
    %901 = vmatpush1.msra.mxu0 %v298
    %902 = vmatprep.subr.mxu0 %v314
    %903 = vmatpush1.msra.mxu0 %v313
    %904 = vmatprep.subr.mxu0 %v329
    %905 = vmatpush1.msra.mxu0 %v328
    %906 = vmatprep.subr.mxu0 %v344
    %907 = vmatpush1.msra.mxu0 %v343
    %908 = vmatprep.subr.mxu0 %v359
    %909 = vmatpush1.msra.mxu0 %v358
    %910 = vmatprep.subr.mxu0 %v423
    %911 = vmatpush1.msra.mxu0 %v420
    %912 = vmatprep.subr.mxu0 0.0
    %913 = vmatpush1.msra.mxu0 0.0
    %914 = vmatprep.subr.mxu0 0.0
    %915 = vmatpush1.msra.mxu0 0.0
    %916 = vmatprep.subr.mxu0 0.0
    %917 = vmatpush1.msra.mxu0 0.0
    %918 = vmatprep.subr.mxu0 0.0
    %919 = vmatpush1.msra.mxu0 0.0
    %920 = vmatprep.subr.mxu0 0.0
    %921 = vmatpush1.msra.mxu0 0.0
    %922 = vmatprep.subr.mxu0 0.0
    %923 = vmatpush1.msra.mxu0 0.0
    %924 = vmatprep.subr.mxu0 0.0
    %925 = vmatpush1.msra.mxu0 0.0
    %926 = vmatprep.subr.mxu0 0.0
    %927 = vmatpush1.msra.mxu0 0.0
    %928 = vmatprep.subr.mxu0 0.0
    %929 = vmatpush1.msra.mxu0 0.0
    %930 = vmatprep.subr.mxu0 0.0
    %931 = vmatpush1.msra.mxu0 0.0
    %932 = vmatprep.subr.mxu0 0.0
    %933 = vmatpush1.msra.mxu0 0.0
    %934 = vmatprep.subr.mxu0 0.0
    %935 = vmatpush1.msra.mxu0 0.0
    %936 = vmatprep.subr.mxu0 0.0
    %937 = vmatpush1.msra.mxu0 0.0
    %938 = vmatprep.subr.mxu0 0.0
    %939 = vmatpush1.msra.mxu0 0.0
    %940 = vmatprep.subr.mxu0 0.0
    %941 = vmatpush1.msra.mxu0 0.0
    %942 = vmatprep.subr.mxu0 0.0
    %943 = vmatpush1.msra.mxu0 0.0
    %944 = vmatprep.subr.mxu0 0.0
    %945 = vmatpush1.msra.mxu0 0.0
    %946 = vmatprep.subr.mxu0 0.0
    %947 = vmatpush1.msra.mxu0 0.0
    %948 = vmatprep.subr.mxu0 0.0
    %949 = vmatpush1.msra.mxu0 0.0
    %950 = vmatprep.subr.mxu0 0.0
    %951 = vmatpush1.msra.mxu0 0.0
    %952 = vmatprep.subr.mxu0 0.0
    %953 = vmatpush1.msra.mxu0 0.0
    %954 = vmatprep.mubr.f32.mxu0 0.0
    %955 = vmatmul.mubr.f32.gmra.mrb[0].mxu0 %v378
    %v956 = vpop.f32.mrb[0].mxu0
    %v957 = vadd.f32 0.0, %v956
    %v958 = vpop.f32.mrb[0].mxu0
    %v959 = vadd.f32 0.0, %v958
    %960 = vmatprep.mubr.f32.mxu0 0.0
    %961 = vmatmul.mubr.f32.gmra.mrb[0].mxu0 %v381
    %v962 = vpop.f32.mrb[0].mxu0
    %v963 = vadd.f32 0.0, %v962
    %v964 = vpop.f32.mrb[0].mxu0
    %v965 = vadd.f32 0.0, %v964
    %966 = vdwg.mxu0
    %967 = vmatprep.subr.mxu0 0.0
    %968 = vmatpush1.msra.mxu0 %v225
    %969 = vmatprep.subr.mxu0 0.0
    %970 = vmatpush1.msra.mxu0 %v240
    %971 = vmatprep.subr.mxu0 0.0
    %972 = vmatpush1.msra.mxu0 %v255
    %973 = vmatprep.subr.mxu0 0.0
    %974 = vmatpush1.msra.mxu0 %v270
    %975 = vmatprep.subr.mxu0 0.0
    %976 = vmatpush1.msra.mxu0 %v285
    %977 = vmatprep.subr.mxu0 0.0
    %978 = vmatpush1.msra.mxu0 %v300
    %979 = vmatprep.subr.mxu0 0.0
    %980 = vmatpush1.msra.mxu0 %v315
    %981 = vmatprep.subr.mxu0 0.0
    %982 = vmatpush1.msra.mxu0 %v330
    %983 = vmatprep.subr.mxu0 0.0
    %984 = vmatpush1.msra.mxu0 %v345
    %985 = vmatprep.subr.mxu0 0.0
    %986 = vmatpush1.msra.mxu0 %v360
    %987 = vmatprep.subr.mxu0 0.0
    %988 = vmatpush1.msra.mxu0 %v426
    %989 = vmatprep.subr.mxu0 0.0
    %990 = vmatpush1.msra.mxu0 0.0
    %991 = vmatprep.subr.mxu0 0.0
    %992 = vmatpush1.msra.mxu0 0.0
    %993 = vmatprep.subr.mxu0 0.0
    %994 = vmatpush1.msra.mxu0 0.0
    %995 = vmatprep.subr.mxu0 0.0
    %996 = vmatpush1.msra.mxu0 0.0
    %997 = vmatprep.subr.mxu0 0.0
    %998 = vmatpush1.msra.mxu0 0.0
    %999 = vmatprep.subr.mxu0 0.0
    %1000 = vmatpush1.msra.mxu0 0.0
    %1001 = vmatprep.subr.mxu0 0.0
    %1002 = vmatpush1.msra.mxu0 0.0
    %1003 = vmatprep.subr.mxu0 0.0
    %1004 = vmatpush1.msra.mxu0 0.0
    %1005 = vmatprep.subr.mxu0 0.0
    %1006 = vmatpush1.msra.mxu0 0.0
    %1007 = vmatprep.subr.mxu0 0.0
    %1008 = vmatpush1.msra.mxu0 0.0
    %1009 = vmatprep.subr.mxu0 0.0
    %1010 = vmatpush1.msra.mxu0 0.0
    %1011 = vmatprep.subr.mxu0 0.0
    %1012 = vmatpush1.msra.mxu0 0.0
    %1013 = vmatprep.subr.mxu0 0.0
    %1014 = vmatpush1.msra.mxu0 0.0
    %1015 = vmatprep.subr.mxu0 0.0
    %1016 = vmatpush1.msra.mxu0 0.0
    %1017 = vmatprep.subr.mxu0 0.0
    %1018 = vmatpush1.msra.mxu0 0.0
    %1019 = vmatprep.subr.mxu0 0.0
    %1020 = vmatpush1.msra.mxu0 0.0
    %1021 = vmatprep.subr.mxu0 0.0
    %1022 = vmatpush1.msra.mxu0 0.0
    %1023 = vmatprep.subr.mxu0 0.0
    %1024 = vmatpush1.msra.mxu0 0.0
    %1025 = vmatprep.subr.mxu0 0.0
    %1026 = vmatpush1.msra.mxu0 0.0
    %1027 = vmatprep.subr.mxu0 0.0
    %1028 = vmatpush1.msra.mxu0 0.0
    %1029 = vmatprep.subr.mxu0 0.0
    %1030 = vmatpush1.msra.mxu0 0.0
    %1031 = vmatprep.mubr.f32.mxu0 0.0
    %1032 = vmatmul.mubr.f32.gmra.mrb[0].mxu0 %v378
    %v1033 = vpop.f32.mrb[0].mxu0
    %v1034 = vadd.f32 0.0, %v1033
    %v1035 = vpop.f32.mrb[0].mxu0
    %1036 = vmatprep.mubr.f32.mxu0 0.0
    %1037 = vmatmul.mubr.f32.gmra.mrb[0].mxu0 %v381
    %v1038 = vpop.f32.mrb[0].mxu0
    %v1039 = vadd.f32 0.0, %v1038
    %v1040 = vpop.f32.mrb[0].mxu0
    %1041 = vdwg.mxu0
    %v1048 = vrot.slane %v574, 7
    %v1049 = vrot.slane %v649, 7
    %v1050 = vrot.slane %v651, 7
    %v1051 = vrot.slane %v580, 7
    %v1052 = vsel %vm198, %v1048, %v1051
    %v1053 = vrot.slane %v655, 7
    %v1054 = vsel %vm198, %v1049, %v1053
    %v1055 = vrot.slane %v657, 7
    %v1056 = vsel %vm198, %v1050, %v1055
    %vm1069 = vcmask 1041408
    %v1070 = vrot.slane %v726, 6
    %v1071 = vrot.slane %v728, 6
    %v1072 = vrot.slane %v803, 6
    %v1073 = vrot.slane %v732, 6
    %v1074 = vsel %vm1069, %v1070, %v1073
    %v1075 = vrot.slane %v734, 6
    %v1076 = vsel %vm1069, %v1071, %v1075
    %v1077 = vrot.slane %v809, 6
    %v1078 = vsel %vm1069, %v1072, %v1077
    %vm1091 = vcmask 1042432
    %v1092 = vrot.slane %v805, 5
    %v1093 = vrot.slane %v880, 5
    %v1094 = vrot.slane %v882, 5
    %v1095 = vrot.slane %v811, 5
    %v1096 = vsel %vm1091, %v1092, %v1095
    %v1097 = vrot.slane %v886, 5
    %v1098 = vsel %vm1091, %v1093, %v1097
    %v1099 = vrot.slane %v888, 5
    %v1100 = vsel %vm1091, %v1094, %v1099
    %vm1113 = vcmask 1043456
    %v1114 = vrot.slane %v957, 4
    %v1115 = vrot.slane %v959, 4
    %v1116 = vrot.slane %v1034, 4
    %v1117 = vrot.slane %v963, 4
    %v1118 = vsel %vm1113, %v1114, %v1117
    %v1119 = vrot.slane %v965, 4
    %v1120 = vsel %vm1113, %v1115, %v1119
    %v1121 = vrot.slane %v1039, 4
    %v1122 = vsel %vm1113, %v1116, %v1121
    %v1126 = vsel %vm198, %v501, %v1048
    %v1127 = vsel %vm198, %v503, %v1049
    %v1128 = vsel %vm198, %v578, %v1050
    %v1129 = vsel %vm1069, %v1052, %v1070
    %v1130 = vsel %vm1069, %v1054, %v1071
    %v1131 = vsel %vm1069, %v1056, %v1072
    %v1132 = vsel %vm1091, %v1074, %v1092
    %v1133 = vsel %vm1091, %v1076, %v1093
    %v1134 = vsel %vm1091, %v1078, %v1094
    %v1135 = vsel %vm1113, %v1096, %v1114
    %v1136 = vsel %vm1113, %v1098, %v1115
    %v1137 = vsel %vm1113, %v1100, %v1116
    %v1138 = vld [vmem:[%s3] sm:$0xff]
    %v1139 = vld [vmem:[%s3 + $0x8] sm:$0xff]
    %v1140 = vld [vmem:[%s3 + $0x10] sm:$0xff]
    %v1141 = vld [vmem:[%s3 + $0x18] sm:$0xff]
    %v1142 = vld [vmem:[%s5] sm:$0x7]
    %v1144 = vlaneseq
    %v1145 = vshrl.u32 %v1144, 7
    %v1146 = vsub.s32 0, %v1145
    %v1147 = vrot.slane %v1142, %v1146
    %v1148 = vlaneseq
    %v1149 = vshrl.u32 %v1148, 7
    %v1150 = vsub.s32 1, %v1149
    %v1151 = vrot.slane %v1142, %v1150
    %v1152 = vlaneseq
    %v1153 = vshrl.u32 %v1152, 7
    %v1154 = vsub.s32 2, %v1153
    %v1155 = vrot.slane %v1142, %v1154
    %vm1159 = vcmask 367616
    %v1161 = vsel %vm1159, %v1138, 0
    %v1164 = vsel %vm1159, %v1139, 0
    %v1167 = vsel %vm1159, %v1140, 0
    %v1170 = vsel %vm1159, %v1141, 0
    %vm1172 = vcmask 1044480
    %v1173 = vsel %vm1172, %v1118, 0
    %v1175 = vsel %vm1172, %v1120, 0
    %v1177 = vsel %vm1172, %v1122, 0
    %1179 = vmatprep.subr.mxu0 %v497
    %1180 = vmatpush1.msra.mxu0 %v495
    %1181 = vmatprep.subr.mxu0 %v1127
    %1182 = vmatpush1.msra.mxu0 %v1126
    %1183 = vmatprep.subr.mxu0 %v1130
    %1184 = vmatpush1.msra.mxu0 %v1129
    %1185 = vmatprep.subr.mxu0 %v1133
    %1186 = vmatpush1.msra.mxu0 %v1132
    %1187 = vmatprep.subr.mxu0 %v1136
    %1188 = vmatpush1.msra.mxu0 %v1135
    %1189 = vmatprep.subr.mxu0 %v1175
    %1190 = vmatpush1.msra.mxu0 %v1173
    %1191 = vmatprep.subr.mxu0 0.0
    %1192 = vmatpush1.msra.mxu0 0.0
    %1193 = vmatprep.subr.mxu0 0.0
    %1194 = vmatpush1.msra.mxu0 0.0
    %1195 = vmatprep.subr.mxu0 0.0
    %1196 = vmatpush1.msra.mxu0 0.0
    %1197 = vmatprep.subr.mxu0 0.0
    %1198 = vmatpush1.msra.mxu0 0.0
    %1199 = vmatprep.subr.mxu0 0.0
    %1200 = vmatpush1.msra.mxu0 0.0
    %1201 = vmatprep.subr.mxu0 0.0
    %1202 = vmatpush1.msra.mxu0 0.0
    %1203 = vmatprep.subr.mxu0 0.0
    %1204 = vmatpush1.msra.mxu0 0.0
    %1205 = vmatprep.subr.mxu0 0.0
    %1206 = vmatpush1.msra.mxu0 0.0
    %1207 = vmatprep.subr.mxu0 0.0
    %1208 = vmatpush1.msra.mxu0 0.0
    %1209 = vmatprep.subr.mxu0 0.0
    %1210 = vmatpush1.msra.mxu0 0.0
    %1211 = vmatprep.subr.mxu0 0.0
    %1212 = vmatpush1.msra.mxu0 0.0
    %1213 = vmatprep.subr.mxu0 0.0
    %1214 = vmatpush1.msra.mxu0 0.0
    %1215 = vmatprep.subr.mxu0 0.0
    %1216 = vmatpush1.msra.mxu0 0.0
    %1217 = vmatprep.subr.mxu0 0.0
    %1218 = vmatpush1.msra.mxu0 0.0
    %1219 = vmatprep.subr.mxu0 0.0
    %1220 = vmatpush1.msra.mxu0 0.0
    %1221 = vmatprep.subr.mxu0 0.0
    %1222 = vmatpush1.msra.mxu0 0.0
    %1223 = vmatprep.subr.mxu0 0.0
    %1224 = vmatpush1.msra.mxu0 0.0
    %1225 = vmatprep.subr.mxu0 0.0
    %1226 = vmatpush1.msra.mxu0 0.0
    %1227 = vmatprep.subr.mxu0 0.0
    %1228 = vmatpush1.msra.mxu0 0.0
    %1229 = vmatprep.subr.mxu0 0.0
    %1230 = vmatpush1.msra.mxu0 0.0
    %1231 = vmatprep.subr.mxu0 0.0
    %1232 = vmatpush1.msra.mxu0 0.0
    %1233 = vmatprep.subr.mxu0 0.0
    %1234 = vmatpush1.msra.mxu0 0.0
    %1235 = vmatprep.subr.mxu0 0.0
    %1236 = vmatpush1.msra.mxu0 0.0
    %1237 = vmatprep.subr.mxu0 0.0
    %1238 = vmatpush1.msra.mxu0 0.0
    %1239 = vmatprep.subr.mxu0 0.0
    %1240 = vmatpush1.msra.mxu0 0.0
    %1241 = vmatprep.subr.mxu0 0.0
    %1242 = vmatpush1.msra.mxu0 0.0
    %1243 = vmatprep.mubr.f32.mxu0 0.0
    %1244 = vmatmul.mubr.f32.gmra.mrb[0].mxu0 %v1161
    %v1245 = vpop.f32.mrb[0].mxu0
    %v1246 = vadd.f32 %v1147, %v1245
    %v1247 = vpop.f32.mrb[0].mxu0
    %v1248 = vadd.f32 %v1151, %v1247
    %1249 = vmatprep.mubr.f32.mxu0 0.0
    %1250 = vmatmul.mubr.f32.gmra.mrb[0].mxu0 %v1164
    %v1251 = vpop.f32.mrb[0].mxu0
    %v1252 = vadd.f32 %v1147, %v1251
    %v1253 = vpop.f32.mrb[0].mxu0
    %v1254 = vadd.f32 %v1151, %v1253
    %1255 = vmatprep.mubr.f32.mxu0 0.0
    %1256 = vmatmul.mubr.f32.gmra.mrb[0].mxu0 %v1167
    %v1257 = vpop.f32.mrb[0].mxu0
    %v1258 = vadd.f32 %v1147, %v1257
    %v1259 = vpop.f32.mrb[0].mxu0
    %v1260 = vadd.f32 %v1151, %v1259
    %1261 = vmatprep.mubr.f32.mxu0 0.0
    %1262 = vmatmul.mubr.f32.gmra.mrb[0].mxu0 %v1170
    %v1263 = vpop.f32.mrb[0].mxu0
    %v1264 = vadd.f32 %v1147, %v1263
    %v1265 = vpop.f32.mrb[0].mxu0
    %v1266 = vadd.f32 %v1151, %v1265
    %1267 = vdwg.mxu0
    %1268 = vmatprep.subr.mxu0 0.0
    %1269 = vmatpush1.msra.mxu0 %v572
    %1270 = vmatprep.subr.mxu0 0.0
    %1271 = vmatpush1.msra.mxu0 %v1128
    %1272 = vmatprep.subr.mxu0 0.0
    %1273 = vmatpush1.msra.mxu0 %v1131
    %1274 = vmatprep.subr.mxu0 0.0
    %1275 = vmatpush1.msra.mxu0 %v1134
    %1276 = vmatprep.subr.mxu0 0.0
    %1277 = vmatpush1.msra.mxu0 %v1137
    %1278 = vmatprep.subr.mxu0 0.0
    %1279 = vmatpush1.msra.mxu0 %v1177
    %1280 = vmatprep.subr.mxu0 0.0
    %1281 = vmatpush1.msra.mxu0 0.0
    %1282 = vmatprep.subr.mxu0 0.0
    %1283 = vmatpush1.msra.mxu0 0.0
    %1284 = vmatprep.subr.mxu0 0.0
    %1285 = vmatpush1.msra.mxu0 0.0
    %1286 = vmatprep.subr.mxu0 0.0
    %1287 = vmatpush1.msra.mxu0 0.0
    %1288 = vmatprep.subr.mxu0 0.0
    %1289 = vmatpush1.msra.mxu0 0.0
    %1290 = vmatprep.subr.mxu0 0.0
    %1291 = vmatpush1.msra.mxu0 0.0
    %1292 = vmatprep.subr.mxu0 0.0
    %1293 = vmatpush1.msra.mxu0 0.0
    %1294 = vmatprep.subr.mxu0 0.0
    %1295 = vmatpush1.msra.mxu0 0.0
    %1296 = vmatprep.subr.mxu0 0.0
    %1297 = vmatpush1.msra.mxu0 0.0
    %1298 = vmatprep.subr.mxu0 0.0
    %1299 = vmatpush1.msra.mxu0 0.0
    %1300 = vmatprep.subr.mxu0 0.0
    %1301 = vmatpush1.msra.mxu0 0.0
    %1302 = vmatprep.subr.mxu0 0.0
    %1303 = vmatpush1.msra.mxu0 0.0
    %1304 = vmatprep.subr.mxu0 0.0
    %1305 = vmatpush1.msra.mxu0 0.0
    %1306 = vmatprep.subr.mxu0 0.0
    %1307 = vmatpush1.msra.mxu0 0.0
    %1308 = vmatprep.subr.mxu0 0.0
    %1309 = vmatpush1.msra.mxu0 0.0
    %1310 = vmatprep.subr.mxu0 0.0
    %1311 = vmatpush1.msra.mxu0 0.0
    %1312 = vmatprep.subr.mxu0 0.0
    %1313 = vmatpush1.msra.mxu0 0.0
    %1314 = vmatprep.subr.mxu0 0.0
    %1315 = vmatpush1.msra.mxu0 0.0
    %1316 = vmatprep.subr.mxu0 0.0
    %1317 = vmatpush1.msra.mxu0 0.0
    %1318 = vmatprep.subr.mxu0 0.0
    %1319 = vmatpush1.msra.mxu0 0.0
    %1320 = vmatprep.subr.mxu0 0.0
    %1321 = vmatpush1.msra.mxu0 0.0
    %1322 = vmatprep.subr.mxu0 0.0
    %1323 = vmatpush1.msra.mxu0 0.0
    %1324 = vmatprep.subr.mxu0 0.0
    %1325 = vmatpush1.msra.mxu0 0.0
    %1326 = vmatprep.subr.mxu0 0.0
    %1327 = vmatpush1.msra.mxu0 0.0
    %1328 = vmatprep.subr.mxu0 0.0
    %1329 = vmatpush1.msra.mxu0 0.0
    %1330 = vmatprep.subr.mxu0 0.0
    %1331 = vmatpush1.msra.mxu0 0.0
    %1332 = vmatprep.mubr.f32.mxu0 0.0
    %1333 = vmatmul.mubr.f32.gmra.mrb[0].mxu0 %v1161
    %v1334 = vpop.f32.mrb[0].mxu0
    %v1335 = vadd.f32 %v1155, %v1334
    %v1336 = vpop.f32.mrb[0].mxu0
    %1337 = vmatprep.mubr.f32.mxu0 0.0
    %1338 = vmatmul.mubr.f32.gmra.mrb[0].mxu0 %v1164
    %v1339 = vpop.f32.mrb[0].mxu0
    %v1340 = vadd.f32 %v1155, %v1339
    %v1341 = vpop.f32.mrb[0].mxu0
    %1342 = vmatprep.mubr.f32.mxu0 0.0
    %1343 = vmatmul.mubr.f32.gmra.mrb[0].mxu0 %v1167
    %v1344 = vpop.f32.mrb[0].mxu0
    %v1345 = vadd.f32 %v1155, %v1344
    %v1346 = vpop.f32.mrb[0].mxu0
    %1347 = vmatprep.mubr.f32.mxu0 0.0
    %1348 = vmatmul.mubr.f32.gmra.mrb[0].mxu0 %v1170
    %v1349 = vpop.f32.mrb[0].mxu0
    %v1350 = vadd.f32 %v1155, %v1349
    %v1351 = vpop.f32.mrb[0].mxu0
    %1352 = vdwg.mxu0
    %v1353 = vadd.f32 %v1246, 3.0
    %v1354 = vadd.f32 %v1248, 3.0
    %v1355 = vadd.f32 %v1335, 3.0
    %v1356 = vadd.f32 %v1252, 3.0
    %v1357 = vadd.f32 %v1254, 3.0
    %v1358 = vadd.f32 %v1340, 3.0
    %v1359 = vadd.f32 %v1258, 3.0
    %v1360 = vadd.f32 %v1260, 3.0
    %v1361 = vadd.f32 %v1345, 3.0
    %v1362 = vadd.f32 %v1264, 3.0
    %v1363 = vadd.f32 %v1266, 3.0
    %v1364 = vadd.f32 %v1350, 3.0
    %v1365 = vmax.f32 %v1353, 0.0
    %v1366 = vmax.f32 %v1354, 0.0
    %v1367 = vmax.f32 %v1355, 0.0
    %v1368 = vmax.f32 %v1356, 0.0
    %v1369 = vmax.f32 %v1357, 0.0
    %v1370 = vmax.f32 %v1358, 0.0
    %v1371 = vmax.f32 %v1359, 0.0
    %v1372 = vmax.f32 %v1360, 0.0
    %v1373 = vmax.f32 %v1361, 0.0
    %v1374 = vmax.f32 %v1362, 0.0
    %v1375 = vmax.f32 %v1363, 0.0
    %v1376 = vmax.f32 %v1364, 0.0
    %v1377 = vmin.f32 %v1365, 6.0
    %v1378 = vmin.f32 %v1366, 6.0
    %v1379 = vmin.f32 %v1367, 6.0
    %v1380 = vmin.f32 %v1368, 6.0
    %v1381 = vmin.f32 %v1369, 6.0
    %v1382 = vmin.f32 %v1370, 6.0
    %v1383 = vmin.f32 %v1371, 6.0
    %v1384 = vmin.f32 %v1372, 6.0
    %v1385 = vmin.f32 %v1373, 6.0
    %v1386 = vmin.f32 %v1374, 6.0
    %v1387 = vmin.f32 %v1375, 6.0
    %v1388 = vmin.f32 %v1376, 6.0
    %v1389 = vmul.f32 %v1246, %v1377
    %v1390 = vmul.f32 %v1248, %v1378
    %v1391 = vmul.f32 %v1335, %v1379
    %v1392 = vmul.f32 %v1252, %v1380
    %v1393 = vmul.f32 %v1254, %v1381
    %v1394 = vmul.f32 %v1340, %v1382
    %v1395 = vmul.f32 %v1258, %v1383
    %v1396 = vmul.f32 %v1260, %v1384
    %v1397 = vmul.f32 %v1345, %v1385
    %v1398 = vmul.f32 %v1264, %v1386
    %v1399 = vmul.f32 %v1266, %v1387
    %v1400 = vmul.f32 %v1350, %v1388
    %v1401 = vmul.f32 %v1389, 0.16666667
    %v1402 = vmul.f32 %v1390, 0.16666667
    %v1403 = vmul.f32 %v1391, 0.16666667
    %v1404 = vmul.f32 %v1392, 0.16666667
    %v1405 = vmul.f32 %v1393, 0.16666667
    %v1406 = vmul.f32 %v1394, 0.16666667
    %v1407 = vmul.f32 %v1395, 0.16666667
    %v1408 = vmul.f32 %v1396, 0.16666667
    %v1409 = vmul.f32 %v1397, 0.16666667
    %v1410 = vmul.f32 %v1398, 0.16666667
    %v1411 = vmul.f32 %v1399, 0.16666667
    %v1412 = vmul.f32 %v1400, 0.16666667
    %1413 = vst [vmem:[%s6] sm:$0xff] %v1401
    %1414 = vst [vmem:[%s6 + $0x8] sm:$0xff] %v1402
    %1415 = vst [vmem:[%s6 + $0x10] sm:$0xff] %v1403
    %1416 = vst [vmem:[%s6 + $0x18] sm:$0xff] %v1404
    %1417 = vst [vmem:[%s6 + $0x20] sm:$0xff] %v1405
    %1418 = vst [vmem:[%s6 + $0x28] sm:$0xff] %v1406
    %1419 = vst [vmem:[%s6 + $0x30] sm:$0xff] %v1407
    %1420 = vst [vmem:[%s6 + $0x38] sm:$0xff] %v1408
    %1421 = vst [vmem:[%s6 + $0x40] sm:$0xff] %v1409
    %1422 = vst [vmem:[%s6 + $0x48] sm:$0xff] %v1410
    %1423 = vst [vmem:[%s6 + $0x50] sm:$0xff] %v1411
    %1424 = vst [vmem:[%s6 + $0x58] sm:$0xff] %v1412
    // Predicated region
    $region30: #{_forward_impl.1} parent=1 // pred_check
      _
    $region31: #{_forward_impl.1} parent=1 // pred_check_branch
      %1426 = sbr.rel (0) target = $region33
    $region32: #{_forward_impl.1} parent=1 // pred_region
      _
    $region33: #{_forward_impl.1} parent=1 // pred_fallthru
      _
    // Predicated region
    $region34: #{_forward_impl.1} parent=1 // pred_check
      _
    $region35: #{_forward_impl.1} parent=1 // pred_check_branch
      %1428 = sbr.rel (0) target = $region37
    $region36: #{_forward_impl.1} parent=1 // pred_region
      _
    $region37: #{_forward_impl.1} parent=1 // pred_fallthru
      _
    %1429 = vsyncpa [#allocation3], 1

</llo_original>
